<compile_context>
chip_gen: v6e
topology: v6e:2x2x1
jax: 0.10.0
libtpu: 0.0.40
codegen_flags: <defaults>
</compile_context>

<pallas_src>
import functools
import math

import jax
import jax.numpy as jnp
from jax.experimental import pallas as pl
from jax.experimental.pallas import tpu as pltpu


def _layernorm_f32(v, w, b, eps=1e-5):
    mu = jnp.mean(v, axis=-1, keepdims=True)
    var = jnp.mean(jnp.square(v - mu), axis=-1, keepdims=True)
    return (v - mu) * jax.lax.rsqrt(var + eps) * w + b


def _rab_kernel(x_ref,
                wq_ref, wk_ref, wv_ref, bq_ref, bk_ref, bv_ref,
                wo_ref, bo_ref,
                ln1w_ref, ln1b_ref, ln2w_ref, ln2b_ref,
                wfc_ref, bfc_ref, wproj_ref, bproj_ref,
                o_ref, *, n_head):
    bt, L, E = x_ref.shape
    Dh = E // n_head
    M = bt * L

    x = x_ref[...].astype(jnp.float32).reshape(M, E)            # (M, E) f32

    # ---- LN1 -> multi-head self-attention -> residual ---------------------
    ln1 = _layernorm_f32(x, ln1w_ref[...], ln1b_ref[...])
    ln1_bf = ln1.astype(jnp.bfloat16)

    # Pre-transposed bf16 weights: y = x @ W (+ b).  1/sqrt(Dh) folded into wq/bq.
    q = jnp.dot(ln1_bf, wq_ref[...], preferred_element_type=jnp.float32) + bq_ref[...]
    k = jnp.dot(ln1_bf, wk_ref[...], preferred_element_type=jnp.float32) + bk_ref[...]
    v = jnp.dot(ln1_bf, wv_ref[...], preferred_element_type=jnp.float32) + bv_ref[...]

    def to_heads(t):                                            # (M, E) -> (bt*H, L, Dh)
        t = t.reshape(bt, L, n_head, Dh)
        t = jnp.transpose(t, (0, 2, 1, 3))
        return t.reshape(bt * n_head, L, Dh)

    qh = to_heads(q).astype(jnp.bfloat16)
    kh = to_heads(k).astype(jnp.bfloat16)
    vh = to_heads(v).astype(jnp.bfloat16)

    # Head-batched scores + numerically-stable softmax (f32 stats, EUP recip).
    s = jnp.einsum('bqd,bkd->bqk', qh, kh, preferred_element_type=jnp.float32)
    # TODO(synk): attn_mask support (additive mask on `s`) not wired; module is used with attn_mask=None.
    s_max = jnp.max(s, axis=-1, keepdims=True)
    e = jnp.exp(s - s_max)
    p = e * pl.reciprocal(jnp.sum(e, axis=-1, keepdims=True), approx=True)

    o = jnp.einsum('bqk,bkd->bqd', p.astype(jnp.bfloat16), vh,
                   preferred_element_type=jnp.float32)          # (bt*H, L, Dh)
    o = o.reshape(bt, n_head, L, Dh)
    o = jnp.transpose(o, (0, 2, 1, 3)).reshape(M, E)

    attn = jnp.dot(o.astype(jnp.bfloat16), wo_ref[...],
                   preferred_element_type=jnp.float32) + bo_ref[...]
    x1 = x + attn

    # ---- LN2 -> MLP (c_fc -> QuickGELU -> c_proj) -> residual --------------
    ln2 = _layernorm_f32(x1, ln2w_ref[...], ln2b_ref[...])
    h1 = jnp.dot(ln2.astype(jnp.bfloat16), wfc_ref[...],
                 preferred_element_type=jnp.float32) + bfc_ref[...]      # (M, 4E)
    g = h1 * jax.nn.sigmoid(1.702 * h1)                                  # QuickGELU (f32)
    m = jnp.dot(g.astype(jnp.bfloat16), wproj_ref[...],
                preferred_element_type=jnp.float32) + bproj_ref[...]     # (M, E)

    o_ref[...] = (x1 + m).reshape(bt, L, E).astype(o_ref.dtype)


def prepare_params(raw_params, *, n_head, compute_dtype=jnp.bfloat16):
    """One-time host-side prep from torch-layout params.

    raw_params (torch layout):
      in_proj_weight (3E,E), in_proj_bias (3E,), out_proj.weight (E,E),
      out_proj.bias (E,), ln_1.weight/bias (E,), ln_2.weight/bias (E,),
      c_fc.weight (4E,E), c_fc.bias (4E,), c_proj.weight (E,4E), c_proj.bias (E,)
    """
    (wqkv, bqkv, wo, bo, ln1w, ln1b, ln2w, ln2b, wfc, bfc, wproj, bproj) = raw_params
    E = wqkv.shape[1]
    Dh = E // n_head
    scale = 1.0 / math.sqrt(Dh)

    row = lambda a: jnp.asarray(a, jnp.float32).reshape(1, -1)

    wq = (wqkv[0 * E:1 * E].T * scale).astype(compute_dtype)   # (E, E), scale folded in
    wk = wqkv[1 * E:2 * E].T.astype(compute_dtype)
    wv = wqkv[2 * E:3 * E].T.astype(compute_dtype)
    bq = row(bqkv[0 * E:1 * E]) * scale
    bk = row(bqkv[1 * E:2 * E])
    bv = row(bqkv[2 * E:3 * E])

    return (wq, wk, wv, bq, bk, bv,
            wo.T.astype(compute_dtype), row(bo),
            row(ln1w), row(ln1b), row(ln2w), row(ln2b),
            wfc.T.astype(compute_dtype), row(bfc),        # (E, 4E)
            wproj.T.astype(compute_dtype), row(bproj))    # (4E, E)


def _pick_block_batch(N, L, E, target_bytes=2 << 20):
    """Largest divisor of N whose (Bt, L, E) f32 slab stays small-ish while
    keeping at least 2 grid steps (megacore / v7x dual-TC)."""
    best = 1
    for d in range(1, N + 1):
        if d > max(1, N // 2):
            break
        if N % d == 0 and d * L * E * 4 <= target_bytes:
            best = d
    return best


def _vmem_estimate_bytes(prepared, bt, L, E, n_head):
    w = sum(int(a.size) * a.dtype.itemsize for a in prepared) * 2   # double-buffered blocks
    m = bt * L
    act = (2 * bt * L * E * 4 * 2                 # x / out blocks, double-buffered
           + m * E * 4 * 6                        # ln / q / k / v / attn / residual temps
           + bt * n_head * L * L * 4 * 2          # scores + probs
           + m * 4 * E * 4)                       # c_fc activation
    return w + act


def residual_attention_block(x_nle, prepared, *, n_head, block_batch=None):
    """x_nle: (N, L, E) float32, batch-major (no HBM transposes needed)."""
    N, L, E = x_nle.shape
    if block_batch is None:
        block_batch = _pick_block_batch(N, L, E)
    assert N % block_batch == 0, "block_batch must divide the batch size"
    grid = (N // block_batch,)

    full = lambda a: pl.BlockSpec(a.shape, lambda b: (0,) * a.ndim)
    xy_spec = pl.BlockSpec((block_batch, L, E), lambda b: (b, 0, 0))

    # Only raise the scoped VMEM limit when the working set actually needs it
    # (kept under the 64 MiB v7x physical VMEM per TensorCore).
    est = _vmem_estimate_bytes(prepared, block_batch, L, E, n_head)
    vmem_limit = min(64 << 20, int(est * 1.25)) if est > (16 << 20) else None

    out = pl.pallas_call(
        functools.partial(_rab_kernel, n_head=n_head),
        out_shape=jax.ShapeDtypeStruct((N, L, E), x_nle.dtype),
        grid_spec=pltpu.PrefetchScalarGridSpec(
            num_scalar_prefetch=0,
            grid=grid,
            in_specs=[xy_spec] + [full(p) for p in prepared],
            out_specs=xy_spec,
        ),
        compiler_params=pltpu.CompilerParams(
            dimension_semantics=("parallel",),
            vmem_limit_bytes=vmem_limit),
    )(x_nle, *prepared)
    return out


def residual_attention_block_lne(x_lne, prepared, *, n_head):
    """PyTorch (L, N, E) layout wrapper. Prefer the (N, L, E) entry point to
    avoid two extra HBM passes over the activations."""
    x = jnp.transpose(x_lne, (1, 0, 2))
    y = residual_attention_block(x, prepared, n_head=n_head)
    return jnp.transpose(y, (1, 0, 2))


def _reference_nle(x, raw, *, n_head):
    """Pure-JAX f32 reference of the same forward pass, batch-major (N, L, E)."""
    (wqkv, bqkv, wo, bo, ln1w, ln1b, ln2w, ln2b, wfc, bfc, wproj, bproj) = raw
    N, L, E = x.shape
    Dh = E // n_head

    def ln(v, w, b):
        mu = jnp.mean(v, -1, keepdims=True)
        var = jnp.mean((v - mu) ** 2, -1, keepdims=True)
        return (v - mu) / jnp.sqrt(var + 1e-5) * w + b

    y = ln(x, ln1w, ln1b)
    qkv = jnp.einsum('nle,fe->nlf', y, wqkv) + bqkv
    q, k, v = jnp.split(qkv, 3, axis=-1)
    q = q.reshape(N, L, n_head, Dh) / math.sqrt(Dh)
    k = k.reshape(N, L, n_head, Dh)
    v = v.reshape(N, L, n_head, Dh)
    s = jnp.einsum('nqhd,nkhd->nhqk', q, k)
    p = jax.nn.softmax(s, axis=-1)
    o = jnp.einsum('nhqk,nkhd->nqhd', p, v).reshape(N, L, E)
    x = x + jnp.einsum('nle,fe->nlf', o, wo) + bo
    y = ln(x, ln2w, ln2b)
    h = jnp.einsum('nle,fe->nlf', y, wfc) + bfc
    g = h * jax.nn.sigmoid(1.702 * h)
    return x + jnp.einsum('nlf,ef->nle', g, wproj) + bproj


if __name__ == "__main__":
    L, N, E, H = 8, 2, 32, 4         # seq, batch, d_model, n_head

    key = jax.random.PRNGKey(0)
    keys = jax.random.split(key, 16)

    # Deterministic synthetic parameters in the torch shapes (no checkpoint load).
    wqkv  = 0.05 * jax.random.normal(keys[0], (3 * E, E), jnp.float32)    # in_proj_weight
    bqkv  = 0.05 * jax.random.normal(keys[1], (3 * E,), jnp.float32)      # in_proj_bias
    wo    = 0.05 * jax.random.normal(keys[2], (E, E), jnp.float32)        # out_proj.weight
    bo    = 0.05 * jax.random.normal(keys[3], (E,), jnp.float32)          # out_proj.bias
    ln1w  = 1.0 + 0.05 * jax.random.normal(keys[4], (E,), jnp.float32)
    ln1b  = 0.05 * jax.random.normal(keys[5], (E,), jnp.float32)
    ln2w  = 1.0 + 0.05 * jax.random.normal(keys[6], (E,), jnp.float32)
    ln2b  = 0.05 * jax.random.normal(keys[7], (E,), jnp.float32)
    wfc   = 0.05 * jax.random.normal(keys[8], (4 * E, E), jnp.float32)    # mlp.c_fc.weight
    bfc   = 0.05 * jax.random.normal(keys[9], (4 * E,), jnp.float32)
    wproj = 0.05 * jax.random.normal(keys[10], (E, 4 * E), jnp.float32)   # mlp.c_proj.weight
    bproj = 0.05 * jax.random.normal(keys[11], (E,), jnp.float32)

    raw = (wqkv, bqkv, wo, bo, ln1w, ln1b, ln2w, ln2b, wfc, bfc, wproj, bproj)
    prepared = prepare_params(raw, n_head=H)          # one-time host-side prep (bf16, transposed)

    x_nle = jax.random.normal(keys[12], (N, L, E), jnp.float32)

    out = residual_attention_block(x_nle, prepared, n_head=H)
    out = jax.block_until_ready(out)

    ref = _reference_nle(x_nle, raw, n_head=H)
    assert out.shape == (N, L, E)
    max_err = float(jnp.max(jnp.abs(out - ref)))
    # bf16 matmul inputs (f32 accumulation) => looser tolerance than pure f32.
    assert jnp.allclose(out, ref, atol=2e-2, rtol=2e-2), f"mismatch vs reference (max err {max_err})"

    # Also exercise the PyTorch (L, N, E) layout wrapper.
    x_lne = jnp.transpose(x_nle, (1, 0, 2))
    out_lne = jax.block_until_ready(residual_attention_block_lne(x_lne, prepared, n_head=H))
    assert jnp.allclose(jnp.transpose(out_lne, (1, 0, 2)), ref, atol=2e-2, rtol=2e-2)

    print("KERNEL_OK")
</pallas_src>

<mosaic_0001>
module attributes {stable_mosaic.version = 11 : i64} {
  func.func @_rab_kernel(%arg0: i32, %arg1: memref<1x8x32xf32, #tpu.memory_space<vmem>>, %arg2: memref<32x32xbf16, #tpu.memory_space<vmem>>, %arg3: memref<32x32xbf16, #tpu.memory_space<vmem>>, %arg4: memref<32x32xbf16, #tpu.memory_space<vmem>>, %arg5: memref<1x32xf32, #tpu.memory_space<vmem>>, %arg6: memref<1x32xf32, #tpu.memory_space<vmem>>, %arg7: memref<1x32xf32, #tpu.memory_space<vmem>>, %arg8: memref<32x32xbf16, #tpu.memory_space<vmem>>, %arg9: memref<1x32xf32, #tpu.memory_space<vmem>>, %arg10: memref<1x32xf32, #tpu.memory_space<vmem>>, %arg11: memref<1x32xf32, #tpu.memory_space<vmem>>, %arg12: memref<1x32xf32, #tpu.memory_space<vmem>>, %arg13: memref<1x32xf32, #tpu.memory_space<vmem>>, %arg14: memref<32x128xbf16, #tpu.memory_space<vmem>>, %arg15: memref<1x128xf32, #tpu.memory_space<vmem>>, %arg16: memref<128x32xbf16, #tpu.memory_space<vmem>>, %arg17: memref<1x32xf32, #tpu.memory_space<vmem>>, %arg18: memref<1x8x32xf32, #tpu.memory_space<vmem>>) attributes {dimension_semantics = [#tpu.dimension_semantics<parallel>], iteration_bounds = array<i64: 2>, scalar_prefetch = 0 : i64, scratch_operands = 0 : i64, tpu.core_type = #tpu.core_type<tc>, window_params = [{transform_indices = @transform_0, window_bounds = array<i64: 1, 8, 32>}, {pipeline_mode = #tpu.pipeline_mode<synchronous>, transform_indices = @transform_1, window_bounds = array<i64: 32, 32>}, {pipeline_mode = #tpu.pipeline_mode<synchronous>, transform_indices = @transform_2, window_bounds = array<i64: 32, 32>}, {pipeline_mode = #tpu.pipeline_mode<synchronous>, transform_indices = @transform_3, window_bounds = array<i64: 32, 32>}, {pipeline_mode = #tpu.pipeline_mode<synchronous>, transform_indices = @transform_4, window_bounds = array<i64: 1, 32>}, {pipeline_mode = #tpu.pipeline_mode<synchronous>, transform_indices = @transform_5, window_bounds = array<i64: 1, 32>}, {pipeline_mode = #tpu.pipeline_mode<synchronous>, transform_indices = @transform_6, window_bounds = array<i64: 1, 32>}, {pipeline_mode = #tpu.pipeline_mode<synchronous>, transform_indices = @transform_7, window_bounds = array<i64: 32, 32>}, {pipeline_mode = #tpu.pipeline_mode<synchronous>, transform_indices = @transform_8, window_bounds = array<i64: 1, 32>}, {pipeline_mode = #tpu.pipeline_mode<synchronous>, transform_indices = @transform_9, window_bounds = array<i64: 1, 32>}, {pipeline_mode = #tpu.pipeline_mode<synchronous>, transform_indices = @transform_10, window_bounds = array<i64: 1, 32>}, {pipeline_mode = #tpu.pipeline_mode<synchronous>, transform_indices = @transform_11, window_bounds = array<i64: 1, 32>}, {pipeline_mode = #tpu.pipeline_mode<synchronous>, transform_indices = @transform_12, window_bounds = array<i64: 1, 32>}, {pipeline_mode = #tpu.pipeline_mode<synchronous>, transform_indices = @transform_13, window_bounds = array<i64: 32, 128>}, {pipeline_mode = #tpu.pipeline_mode<synchronous>, transform_indices = @transform_14, window_bounds = array<i64: 1, 128>}, {pipeline_mode = #tpu.pipeline_mode<synchronous>, transform_indices = @transform_15, window_bounds = array<i64: 128, 32>}, {pipeline_mode = #tpu.pipeline_mode<synchronous>, transform_indices = @transform_16, window_bounds = array<i64: 1, 32>}, {transform_indices = @transform_17, window_bounds = array<i64: 1, 8, 32>}]} {
    %c0 = arith.constant 0 : index
    %c0_0 = arith.constant 0 : index
    %c0_1 = arith.constant 0 : index
    %0 = vector.load %arg1[%c0, %c0_0, %c0_1] : memref<1x8x32xf32, #tpu.memory_space<vmem>>, vector<1x8x32xf32>
    %1 = vector.shape_cast %0 : vector<1x8x32xf32> to vector<8x32xf32>
    %c0_2 = arith.constant 0 : index
    %c0_3 = arith.constant 0 : index
    %2 = vector.load %arg10[%c0_2, %c0_3] : memref<1x32xf32, #tpu.memory_space<vmem>>, vector<1x32xf32>
    %c0_4 = arith.constant 0 : index
    %c0_5 = arith.constant 0 : index
    %3 = vector.load %arg11[%c0_4, %c0_5] : memref<1x32xf32, #tpu.memory_space<vmem>>, vector<1x32xf32>
    %cst = arith.constant dense<0.000000e+00> : vector<8xf32>
    %4 = vector.multi_reduction <add>, %1, %cst [1] : vector<8x32xf32> to vector<8xf32>
    %5 = vector.shape_cast %4 : vector<8xf32> to vector<8x1xf32>
    %cst_6 = arith.constant 3.200000e+01 : f32
    %6 = vector.broadcast %cst_6 : f32 to vector<8x1xf32>
    %7 = arith.divf %5, %6 : vector<8x1xf32>
    %8 = vector.broadcast %7 : vector<8x1xf32> to vector<8x32xf32>
    %9 = arith.subf %1, %8 : vector<8x32xf32>
    %10 = arith.mulf %9, %9 : vector<8x32xf32>
    %cst_7 = arith.constant dense<0.000000e+00> : vector<8xf32>
    %11 = vector.multi_reduction <add>, %10, %cst_7 [1] : vector<8x32xf32> to vector<8xf32>
    %12 = vector.shape_cast %11 : vector<8xf32> to vector<8x1xf32>
    %cst_8 = arith.constant 3.200000e+01 : f32
    %13 = vector.broadcast %cst_8 : f32 to vector<8x1xf32>
    %14 = arith.divf %12, %13 : vector<8x1xf32>
    %15 = vector.broadcast %7 : vector<8x1xf32> to vector<8x32xf32>
    %16 = arith.subf %1, %15 : vector<8x32xf32>
    %cst_9 = arith.constant 9.99999974E-6 : f32
    %17 = vector.broadcast %cst_9 : f32 to vector<8x1xf32>
    %18 = arith.addf %14, %17 : vector<8x1xf32>
    %19 = math.rsqrt %18 : vector<8x1xf32>
    %20 = vector.broadcast %19 : vector<8x1xf32> to vector<8x32xf32>
    %21 = arith.mulf %16, %20 : vector<8x32xf32>
    %22 = vector.broadcast %2 : vector<1x32xf32> to vector<8x32xf32>
    %23 = arith.mulf %21, %22 : vector<8x32xf32>
    %24 = vector.broadcast %3 : vector<1x32xf32> to vector<8x32xf32>
    %25 = arith.addf %23, %24 : vector<8x32xf32>
    %26 = arith.truncf %25 : vector<8x32xf32> to vector<8x32xbf16>
    %c0_10 = arith.constant 0 : index
    %c0_11 = arith.constant 0 : index
    %27 = vector.load %arg2[%c0_10, %c0_11] : memref<32x32xbf16, #tpu.memory_space<vmem>>, vector<32x32xbf16>
    %cst_12 = arith.constant dense<0.000000e+00> : vector<8x32xf32>
    %28 = tpu.matmul %26, %27, %cst_12 {dimension_numbers = #tpu.dot_dimension_numbers<[1], [0], [0], [1], [0, 0, 1, 1], [], []>} : vector<8x32xbf16>, vector<32x32xbf16>, vector<8x32xf32> -> vector<8x32xf32>
    %c0_13 = arith.constant 0 : index
    %c0_14 = arith.constant 0 : index
    %29 = vector.load %arg5[%c0_13, %c0_14] : memref<1x32xf32, #tpu.memory_space<vmem>>, vector<1x32xf32>
    %30 = vector.broadcast %29 : vector<1x32xf32> to vector<8x32xf32>
    %31 = arith.addf %28, %30 : vector<8x32xf32>
    %c0_15 = arith.constant 0 : index
    %c0_16 = arith.constant 0 : index
    %32 = vector.load %arg3[%c0_15, %c0_16] : memref<32x32xbf16, #tpu.memory_space<vmem>>, vector<32x32xbf16>
    %cst_17 = arith.constant dense<0.000000e+00> : vector<8x32xf32>
    %33 = tpu.matmul %26, %32, %cst_17 {dimension_numbers = #tpu.dot_dimension_numbers<[1], [0], [0], [1], [0, 0, 1, 1], [], []>} : vector<8x32xbf16>, vector<32x32xbf16>, vector<8x32xf32> -> vector<8x32xf32>
    %c0_18 = arith.constant 0 : index
    %c0_19 = arith.constant 0 : index
    %34 = vector.load %arg6[%c0_18, %c0_19] : memref<1x32xf32, #tpu.memory_space<vmem>>, vector<1x32xf32>
    %35 = vector.broadcast %34 : vector<1x32xf32> to vector<8x32xf32>
    %36 = arith.addf %33, %35 : vector<8x32xf32>
    %c0_20 = arith.constant 0 : index
    %c0_21 = arith.constant 0 : index
    %37 = vector.load %arg4[%c0_20, %c0_21] : memref<32x32xbf16, #tpu.memory_space<vmem>>, vector<32x32xbf16>
    %cst_22 = arith.constant dense<0.000000e+00> : vector<8x32xf32>
    %38 = tpu.matmul %26, %37, %cst_22 {dimension_numbers = #tpu.dot_dimension_numbers<[1], [0], [0], [1], [0, 0, 1, 1], [], []>} : vector<8x32xbf16>, vector<32x32xbf16>, vector<8x32xf32> -> vector<8x32xf32>
    %c0_23 = arith.constant 0 : index
    %c0_24 = arith.constant 0 : index
    %39 = vector.load %arg7[%c0_23, %c0_24] : memref<1x32xf32, #tpu.memory_space<vmem>>, vector<1x32xf32>
    %40 = vector.broadcast %39 : vector<1x32xf32> to vector<8x32xf32>
    %41 = arith.addf %38, %40 : vector<8x32xf32>
    %42 = vector.shape_cast %31 : vector<8x32xf32> to vector<1x8x4x8xf32>
    %43 = tpu.transpose %42, [0, 2, 1, 3] : vector<1x8x4x8xf32> -> vector<1x4x8x8xf32>
    %44 = vector.shape_cast %43 : vector<1x4x8x8xf32> to vector<4x8x8xf32>
    %45 = arith.truncf %44 : vector<4x8x8xf32> to vector<4x8x8xbf16>
    %46 = vector.shape_cast %36 : vector<8x32xf32> to vector<1x8x4x8xf32>
    %47 = tpu.transpose %46, [0, 2, 1, 3] : vector<1x8x4x8xf32> -> vector<1x4x8x8xf32>
    %48 = vector.shape_cast %47 : vector<1x4x8x8xf32> to vector<4x8x8xf32>
    %49 = arith.truncf %48 : vector<4x8x8xf32> to vector<4x8x8xbf16>
    %50 = vector.shape_cast %41 : vector<8x32xf32> to vector<1x8x4x8xf32>
    %51 = tpu.transpose %50, [0, 2, 1, 3] : vector<1x8x4x8xf32> -> vector<1x4x8x8xf32>
    %52 = vector.shape_cast %51 : vector<1x4x8x8xf32> to vector<4x8x8xf32>
    %53 = arith.truncf %52 : vector<4x8x8xf32> to vector<4x8x8xbf16>
    "tpu.trace_start"() <{level = 10 : i32, message = "bqd,bkd->bqk"}> : () -> ()
    %cst_25 = arith.constant dense<0.000000e+00> : vector<4x8x8xf32>
    %54 = tpu.matmul %45, %49, %cst_25 {dimension_numbers = #tpu.dot_dimension_numbers<[2], [2], [1], [1], [0, 0, 0, 1, 1, 1], [0], [0]>} : vector<4x8x8xbf16>, vector<4x8x8xbf16>, vector<4x8x8xf32> -> vector<4x8x8xf32>
    "tpu.trace_stop"() : () -> ()
    %cst_26 = arith.constant dense<0xFF800000> : vector<4x8xf32>
    %55 = vector.multi_reduction <maximumf>, %54, %cst_26 [2] : vector<4x8x8xf32> to vector<4x8xf32>
    %56 = vector.shape_cast %55 : vector<4x8xf32> to vector<4x8x1xf32>
    %57 = vector.broadcast %56 : vector<4x8x1xf32> to vector<4x8x8xf32>
    %58 = arith.subf %54, %57 : vector<4x8x8xf32>
    %59 = math.exp %58 : vector<4x8x8xf32>
    %cst_27 = arith.constant dense<0.000000e+00> : vector<4x8xf32>
    %60 = vector.multi_reduction <add>, %59, %cst_27 [2] : vector<4x8x8xf32> to vector<4x8xf32>
    %61 = vector.shape_cast %60 : vector<4x8xf32> to vector<4x8x1xf32>
    %62 = tpu.reciprocal %61 {approx = true} : vector<4x8x1xf32> -> vector<4x8x1xf32>
    %63 = vector.broadcast %62 : vector<4x8x1xf32> to vector<4x8x8xf32>
    %64 = arith.mulf %59, %63 : vector<4x8x8xf32>
    %65 = arith.truncf %64 : vector<4x8x8xf32> to vector<4x8x8xbf16>
    "tpu.trace_start"() <{level = 10 : i32, message = "bqk,bkd->bqd"}> : () -> ()
    %cst_28 = arith.constant dense<0.000000e+00> : vector<4x8x8xf32>
    %66 = tpu.matmul %65, %53, %cst_28 {dimension_numbers = #tpu.dot_dimension_numbers<[2], [1], [1], [2], [0, 0, 0, 1, 1, 2], [0], [0]>} : vector<4x8x8xbf16>, vector<4x8x8xbf16>, vector<4x8x8xf32> -> vector<4x8x8xf32>
    "tpu.trace_stop"() : () -> ()
    %67 = vector.shape_cast %66 : vector<4x8x8xf32> to vector<1x4x8x8xf32>
    %68 = tpu.transpose %67, [0, 2, 1, 3] : vector<1x4x8x8xf32> -> vector<1x8x4x8xf32>
    %69 = vector.shape_cast %68 : vector<1x8x4x8xf32> to vector<8x32xf32>
    %70 = arith.truncf %69 : vector<8x32xf32> to vector<8x32xbf16>
    %c0_29 = arith.constant 0 : index
    %c0_30 = arith.constant 0 : index
    %71 = vector.load %arg8[%c0_29, %c0_30] : memref<32x32xbf16, #tpu.memory_space<vmem>>, vector<32x32xbf16>
    %cst_31 = arith.constant dense<0.000000e+00> : vector<8x32xf32>
    %72 = tpu.matmul %70, %71, %cst_31 {dimension_numbers = #tpu.dot_dimension_numbers<[1], [0], [0], [1], [0, 0, 1, 1], [], []>} : vector<8x32xbf16>, vector<32x32xbf16>, vector<8x32xf32> -> vector<8x32xf32>
    %c0_32 = arith.constant 0 : index
    %c0_33 = arith.constant 0 : index
    %73 = vector.load %arg9[%c0_32, %c0_33] : memref<1x32xf32, #tpu.memory_space<vmem>>, vector<1x32xf32>
    %74 = vector.broadcast %73 : vector<1x32xf32> to vector<8x32xf32>
    %75 = arith.addf %72, %74 : vector<8x32xf32>
    %76 = arith.addf %1, %75 : vector<8x32xf32>
    %c0_34 = arith.constant 0 : index
    %c0_35 = arith.constant 0 : index
    %77 = vector.load %arg12[%c0_34, %c0_35] : memref<1x32xf32, #tpu.memory_space<vmem>>, vector<1x32xf32>
    %c0_36 = arith.constant 0 : index
    %c0_37 = arith.constant 0 : index
    %78 = vector.load %arg13[%c0_36, %c0_37] : memref<1x32xf32, #tpu.memory_space<vmem>>, vector<1x32xf32>
    %cst_38 = arith.constant dense<0.000000e+00> : vector<8xf32>
    %79 = vector.multi_reduction <add>, %76, %cst_38 [1] : vector<8x32xf32> to vector<8xf32>
    %80 = vector.shape_cast %79 : vector<8xf32> to vector<8x1xf32>
    %cst_39 = arith.constant 3.200000e+01 : f32
    %81 = vector.broadcast %cst_39 : f32 to vector<8x1xf32>
    %82 = arith.divf %80, %81 : vector<8x1xf32>
    %83 = vector.broadcast %82 : vector<8x1xf32> to vector<8x32xf32>
    %84 = arith.subf %76, %83 : vector<8x32xf32>
    %85 = arith.mulf %84, %84 : vector<8x32xf32>
    %cst_40 = arith.constant dense<0.000000e+00> : vector<8xf32>
    %86 = vector.multi_reduction <add>, %85, %cst_40 [1] : vector<8x32xf32> to vector<8xf32>
    %87 = vector.shape_cast %86 : vector<8xf32> to vector<8x1xf32>
    %cst_41 = arith.constant 3.200000e+01 : f32
    %88 = vector.broadcast %cst_41 : f32 to vector<8x1xf32>
    %89 = arith.divf %87, %88 : vector<8x1xf32>
    %90 = vector.broadcast %82 : vector<8x1xf32> to vector<8x32xf32>
    %91 = arith.subf %76, %90 : vector<8x32xf32>
    %cst_42 = arith.constant 9.99999974E-6 : f32
    %92 = vector.broadcast %cst_42 : f32 to vector<8x1xf32>
    %93 = arith.addf %89, %92 : vector<8x1xf32>
    %94 = math.rsqrt %93 : vector<8x1xf32>
    %95 = vector.broadcast %94 : vector<8x1xf32> to vector<8x32xf32>
    %96 = arith.mulf %91, %95 : vector<8x32xf32>
    %97 = vector.broadcast %77 : vector<1x32xf32> to vector<8x32xf32>
    %98 = arith.mulf %96, %97 : vector<8x32xf32>
    %99 = vector.broadcast %78 : vector<1x32xf32> to vector<8x32xf32>
    %100 = arith.addf %98, %99 : vector<8x32xf32>
    %101 = arith.truncf %100 : vector<8x32xf32> to vector<8x32xbf16>
    %c0_43 = arith.constant 0 : index
    %c0_44 = arith.constant 0 : index
    %102 = vector.load %arg14[%c0_43, %c0_44] : memref<32x128xbf16, #tpu.memory_space<vmem>>, vector<32x128xbf16>
    %cst_45 = arith.constant dense<0.000000e+00> : vector<8x128xf32>
    %103 = tpu.matmul %101, %102, %cst_45 {dimension_numbers = #tpu.dot_dimension_numbers<[1], [0], [0], [1], [0, 0, 1, 1], [], []>} : vector<8x32xbf16>, vector<32x128xbf16>, vector<8x128xf32> -> vector<8x128xf32>
    %c0_46 = arith.constant 0 : index
    %c0_47 = arith.constant 0 : index
    %104 = vector.load %arg15[%c0_46, %c0_47] : memref<1x128xf32, #tpu.memory_space<vmem>>, vector<1x128xf32>
    %105 = vector.broadcast %104 : vector<1x128xf32> to vector<8x128xf32>
    %106 = arith.addf %103, %105 : vector<8x128xf32>
    %cst_48 = arith.constant 1.702000e+00 : f32
    %107 = vector.broadcast %cst_48 : f32 to vector<8x128xf32>
    %108 = arith.mulf %107, %106 : vector<8x128xf32>
    %109 = arith.negf %108 : vector<8x128xf32>
    %110 = math.exp %109 : vector<8x128xf32>
    %cst_49 = arith.constant 1.000000e+00 : f32
    %111 = vector.broadcast %cst_49 : f32 to vector<8x128xf32>
    %112 = arith.addf %111, %110 : vector<8x128xf32>
    %113 = arith.divf %111, %112 : vector<8x128xf32>
    %114 = arith.mulf %106, %113 : vector<8x128xf32>
    %115 = arith.truncf %114 : vector<8x128xf32> to vector<8x128xbf16>
    %c0_50 = arith.constant 0 : index
    %c0_51 = arith.constant 0 : index
    %116 = vector.load %arg16[%c0_50, %c0_51] : memref<128x32xbf16, #tpu.memory_space<vmem>>, vector<128x32xbf16>
    %cst_52 = arith.constant dense<0.000000e+00> : vector<8x32xf32>
    %117 = tpu.matmul %115, %116, %cst_52 {dimension_numbers = #tpu.dot_dimension_numbers<[1], [0], [0], [1], [0, 0, 1, 1], [], []>} : vector<8x128xbf16>, vector<128x32xbf16>, vector<8x32xf32> -> vector<8x32xf32>
    %c0_53 = arith.constant 0 : index
    %c0_54 = arith.constant 0 : index
    %118 = vector.load %arg17[%c0_53, %c0_54] : memref<1x32xf32, #tpu.memory_space<vmem>>, vector<1x32xf32>
    %119 = vector.broadcast %118 : vector<1x32xf32> to vector<8x32xf32>
    %120 = arith.addf %117, %119 : vector<8x32xf32>
    %121 = arith.addf %76, %120 : vector<8x32xf32>
    %122 = vector.shape_cast %121 : vector<8x32xf32> to vector<1x8x32xf32>
    %c0_55 = arith.constant 0 : index
    %c0_56 = arith.constant 0 : index
    %c0_57 = arith.constant 0 : index
    %123 = vector.load %arg18[%c0_55, %c0_56, %c0_57] : memref<1x8x32xf32, #tpu.memory_space<vmem>>, vector<1x8x32xf32>
    tpu.vector_store %arg18[%c0_55, %c0_56, %c0_57], %122 {strides = array<i32>} : memref<1x8x32xf32, #tpu.memory_space<vmem>>, vector<1x8x32xf32>,
    return
  }
  func.func @transform_0(%arg0: i32) -> (i32, i32, i32) {
    %c0_i32 = arith.constant 0 : i32
    %c0_i32_0 = arith.constant 0 : i32
    %c0_i32_1 = arith.constant 0 : i32
    return %arg0, %c0_i32, %c0_i32_0 : i32, i32, i32
  }
  func.func @transform_1(%arg0: i32) -> (i32, i32) {
    %c0_i32 = arith.constant 0 : i32
    %c0_i32_0 = arith.constant 0 : i32
    %c0_i32_1 = arith.constant 0 : i32
    return %c0_i32, %c0_i32_0 : i32, i32
  }
  func.func @transform_2(%arg0: i32) -> (i32, i32) {
    %c0_i32 = arith.constant 0 : i32
    %c0_i32_0 = arith.constant 0 : i32
    %c0_i32_1 = arith.constant 0 : i32
    return %c0_i32, %c0_i32_0 : i32, i32
  }
  func.func @transform_3(%arg0: i32) -> (i32, i32) {
    %c0_i32 = arith.constant 0 : i32
    %c0_i32_0 = arith.constant 0 : i32
    %c0_i32_1 = arith.constant 0 : i32
    return %c0_i32, %c0_i32_0 : i32, i32
  }
  func.func @transform_4(%arg0: i32) -> (i32, i32) {
    %c0_i32 = arith.constant 0 : i32
    %c0_i32_0 = arith.constant 0 : i32
    %c0_i32_1 = arith.constant 0 : i32
    return %c0_i32, %c0_i32_0 : i32, i32
  }
  func.func @transform_5(%arg0: i32) -> (i32, i32) {
    %c0_i32 = arith.constant 0 : i32
    %c0_i32_0 = arith.constant 0 : i32
    %c0_i32_1 = arith.constant 0 : i32
    return %c0_i32, %c0_i32_0 : i32, i32
  }
  func.func @transform_6(%arg0: i32) -> (i32, i32) {
    %c0_i32 = arith.constant 0 : i32
    %c0_i32_0 = arith.constant 0 : i32
    %c0_i32_1 = arith.constant 0 : i32
    return %c0_i32, %c0_i32_0 : i32, i32
  }
  func.func @transform_7(%arg0: i32) -> (i32, i32) {
    %c0_i32 = arith.constant 0 : i32
    %c0_i32_0 = arith.constant 0 : i32
    %c0_i32_1 = arith.constant 0 : i32
    return %c0_i32, %c0_i32_0 : i32, i32
  }
  func.func @transform_8(%arg0: i32) -> (i32, i32) {
    %c0_i32 = arith.constant 0 : i32
    %c0_i32_0 = arith.constant 0 : i32
    %c0_i32_1 = arith.constant 0 : i32
    return %c0_i32, %c0_i32_0 : i32, i32
  }
  func.func @transform_9(%arg0: i32) -> (i32, i32) {
    %c0_i32 = arith.constant 0 : i32
    %c0_i32_0 = arith.constant 0 : i32
    %c0_i32_1 = arith.constant 0 : i32
    return %c0_i32, %c0_i32_0 : i32, i32
  }
  func.func @transform_10(%arg0: i32) -> (i32, i32) {
    %c0_i32 = arith.constant 0 : i32
    %c0_i32_0 = arith.constant 0 : i32
    %c0_i32_1 = arith.constant 0 : i32
    return %c0_i32, %c0_i32_0 : i32, i32
  }
  func.func @transform_11(%arg0: i32) -> (i32, i32) {
    %c0_i32 = arith.constant 0 : i32
    %c0_i32_0 = arith.constant 0 : i32
    %c0_i32_1 = arith.constant 0 : i32
    return %c0_i32, %c0_i32_0 : i32, i32
  }
  func.func @transform_12(%arg0: i32) -> (i32, i32) {
    %c0_i32 = arith.constant 0 : i32
    %c0_i32_0 = arith.constant 0 : i32
    %c0_i32_1 = arith.constant 0 : i32
    return %c0_i32, %c0_i32_0 : i32, i32
  }
  func.func @transform_13(%arg0: i32) -> (i32, i32) {
    %c0_i32 = arith.constant 0 : i32
    %c0_i32_0 = arith.constant 0 : i32
    %c0_i32_1 = arith.constant 0 : i32
    return %c0_i32, %c0_i32_0 : i32, i32
  }
  func.func @transform_14(%arg0: i32) -> (i32, i32) {
    %c0_i32 = arith.constant 0 : i32
    %c0_i32_0 = arith.constant 0 : i32
    %c0_i32_1 = arith.constant 0 : i32
    return %c0_i32, %c0_i32_0 : i32, i32
  }
  func.func @transform_15(%arg0: i32) -> (i32, i32) {
    %c0_i32 = arith.constant 0 : i32
    %c0_i32_0 = arith.constant 0 : i32
    %c0_i32_1 = arith.constant 0 : i32
    return %c0_i32, %c0_i32_0 : i32, i32
  }
  func.func @transform_16(%arg0: i32) -> (i32, i32) {
    %c0_i32 = arith.constant 0 : i32
    %c0_i32_0 = arith.constant 0 : i32
    %c0_i32_1 = arith.constant 0 : i32
    return %c0_i32, %c0_i32_0 : i32, i32
  }
  func.func @transform_17(%arg0: i32) -> (i32, i32, i32) {
    %c0_i32 = arith.constant 0 : i32
    %c0_i32_0 = arith.constant 0 : i32
    %c0_i32_1 = arith.constant 0 : i32
    return %arg0, %c0_i32, %c0_i32_0 : i32, i32, i32
  }
}

</mosaic_0001>

<llo_original>
// kernel: tpu_custom_call.1
$region0: #{tpu_custom_call.1}
  #allocation0 [shape = 'u32[]', space=smem, size = 0x4, offset = 0x4, fixed_abs, tag = 'smem constant byte address 0x4 - core index']
  #allocation1 [shape = 'u32[144,128]{1,0:T(1,128)}', space=vmem, size = 0x12000, scoped, tag = 'internal scratch']
  %s0 = inlined_call_operand.vmem [shape: f32[2,8,32], index: 0, kind: input, shape index: {}]
  %s1 = inlined_call_operand.vmem [shape: bf16[32,32], index: 1, kind: input, shape index: {}]
  %s2 = inlined_call_operand.vmem [shape: bf16[32,32], index: 2, kind: input, shape index: {}]
  %s3 = inlined_call_operand.vmem [shape: bf16[32,32], index: 3, kind: input, shape index: {}]
  %s4 = inlined_call_operand.vmem [shape: f32[1,32], index: 4, kind: input, shape index: {}]
  %s5 = inlined_call_operand.vmem [shape: f32[1,32], index: 5, kind: input, shape index: {}]
  %s6 = inlined_call_operand.vmem [shape: f32[1,32], index: 6, kind: input, shape index: {}]
  %s7 = inlined_call_operand.vmem [shape: bf16[32,32], index: 7, kind: input, shape index: {}]
  %s8 = inlined_call_operand.vmem [shape: f32[1,32], index: 8, kind: input, shape index: {}]
  %s9 = inlined_call_operand.vmem [shape: f32[1,32], index: 9, kind: input, shape index: {}]
  %s10 = inlined_call_operand.vmem [shape: f32[1,32], index: 10, kind: input, shape index: {}]
  %s11 = inlined_call_operand.vmem [shape: f32[1,32], index: 11, kind: input, shape index: {}]
  %s12 = inlined_call_operand.vmem [shape: f32[1,32], index: 12, kind: input, shape index: {}]
  %s13 = inlined_call_operand.hbm [shape: bf16[32,128], index: 13, kind: input, shape index: {}]
  %s14 = inlined_call_operand.vmem [shape: f32[1,128], index: 14, kind: input, shape index: {}]
  %s15 = inlined_call_operand.vmem [shape: bf16[128,32], index: 15, kind: input, shape index: {}]
  %s16 = inlined_call_operand.vmem [shape: f32[1,32], index: 16, kind: input, shape index: {}]
  %s17 = inlined_call_operand.hbm [shape: f32[2,8,32], index: 17, kind: output, shape index: {}]
  %s18 = sld [smem:[#allocation0]]
  $region105: #{tpu_custom_call.1} parent=0
    _
  %s20 = ssub.s32 1, %s18
  %s21 = scalar_select 0, %s20, %s18
  $region1: #{tpu_custom_call.1} parent=0
    #allocation2 [shape = 'u8[8192]{0}', space=vmem, size = 0x2000, scoped, tag = 'input window, operand 13, single buffered']
    #allocation3 [shape = 's32[2]{0}', space=sflag, size = 0x8, scoped, tag = 'scoped memory for tpu_custom_call.1']
    #allocation4 [shape = 's32[2]{0}', space=sflag, size = 0x8, scoped, tag = 'scoped memory for tpu_custom_call.1']
    #allocation5 [shape = 'u8[8192]{0}', space=vmem, size = 0x2000, scoped, tag = 'output window, operand 0']
    %22 = vsyncpa [#allocation3], 0
    %23 = vsyncpa [#allocation4], 0
    %s24 = scalar_lea.sflag [#allocation4], 1
    %25 = vsyncpa %s24, 0
    loop: start=0, step=1, limit=4
    $region2: #{tpu_custom_call.1} parent=1 // loop_pre_header
      _
    $region3: #{tpu_custom_call.1} parent=1 // loop_header
      %s27 = sphi 0, %s31
      %p28 = scmp.ge.s32.totalorder %s27, 4
      %s37 = sphi 0, %s39
      %s40 = sphi 0, %s37
      %s41 = sphi 0, %s40
      %s57 = sphi 0, %s41
      %s61 = sphi 0, %s61
      %s63 = sphi 0, %s61
      %s64 = sphi 0, %s63
      %s78 = sphi 0, %s64
      %s82 = sphi 0, %s82
      %s84 = sphi 0, %s82
      %s85 = sphi 0, %s84
      %s99 = sphi 0, %s85
      %s103 = sphi 0, %s103
      %s105 = sphi 0, %s103
      %s106 = sphi 0, %s105
      %s120 = sphi 0, %s106
      %s124 = sphi 0, %s124
      %s126 = sphi 0, %s124
      %s127 = sphi 0, %s126
      %s141 = sphi 0, %s127
      %s145 = sphi 0, %s145
      %s147 = sphi 0, %s145
      %s148 = sphi 0, %s147
      %s162 = sphi 0, %s148
      %s166 = sphi 0, %s166
      %s168 = sphi 0, %s166
      %s169 = sphi 0, %s168
      %s183 = sphi 0, %s169
      %s187 = sphi 0, %s187
      %s189 = sphi 0, %s187
      %s190 = sphi 0, %s189
      %s204 = sphi 0, %s190
      %s208 = sphi 0, %s208
      %s210 = sphi 0, %s208
      %s211 = sphi 0, %s210
      %s225 = sphi 0, %s211
      %s229 = sphi 0, %s229
      %s231 = sphi 0, %s229
      %s232 = sphi 0, %s231
      %s246 = sphi 0, %s232
      %s250 = sphi 0, %s250
      %s252 = sphi 0, %s250
      %s253 = sphi 0, %s252
      %s267 = sphi 0, %s253
      %s271 = sphi 0, %s271
      %s273 = sphi 0, %s271
      %s274 = sphi 0, %s273
      %s288 = sphi 0, %s274
      %s292 = sphi 0, %s292
      %s294 = sphi 0, %s292
      %s295 = sphi 0, %s294
      %s309 = sphi 0, %s295
      %s313 = sphi 0, %s313
      %s315 = sphi 0, %s313
      %s316 = sphi 0, %s315
      %s330 = sphi 0, %s316
      %s334 = sphi 0, %s334
      %s336 = sphi 0, %s334
      %s337 = sphi 0, %s336
      %s351 = sphi 0, %s337
      %s355 = sphi 0, %s355
      %s357 = sphi 0, %s355
      %s358 = sphi 0, %s357
      %s372 = sphi 0, %s358
      %s376 = sphi 0, %s376
      %s378 = sphi 0, %s376
      %s379 = sphi 0, %s378
      %s393 = sphi 0, %s379
      %s399 = sphi 0, %s401
      %s402 = sphi 0, %s399
      %s403 = sphi 0, %s402
      %s419 = sphi 0, %s403
    $region4: #{tpu_custom_call.1} parent=1 // loop_header_branch
      %30 = sbr.rel (%p28) target = $region8
    $region5: #{tpu_custom_call.1} parent=1 // loop_body
      %s32 = ssub.s32 %s27, 1
      %s33 = ssub.s32 %s27, 2
      %s34 = sadd.s32 %s27, 1
      %s35 = ssub.s32 %s27, %s34
      %p36 = scmp.eq.s32.totalorder %s35, 0
      %s38 = sadd.s32 %s37, 1
      %s39 = scalar_select %p36, %s37, %s38
      %p42 = pneg %p36
      %p43 = scmp.eq.s32.totalorder %s27, 1
      %p44 = por %p42, %p43
      %p45 = scmp.ne.s32.totalorder %s37, %s40
      %p46 = scmp.eq.s32.totalorder %s27, 0
      %p47 = por %p45, %p46
      %p48 = scmp.ne.s32.totalorder %s37, %s40
      %p49 = scmp.eq.s32.totalorder %s32, 1
      %p50 = por %p48, %p49
      %p51 = scmp.ne.s32.totalorder %s40, %s41
      %p52 = scmp.eq.s32.totalorder %s32, 0
      %p53 = por %p51, %p52
      %p54 = scmp.ne.s32.totalorder %s40, %s41
      %p55 = scmp.eq.s32.totalorder %s33, 1
      %p56 = por %p54, %p55
      %p58 = scmp.ne.s32.totalorder %s41, %s57
      %p59 = scmp.eq.s32.totalorder %s33, 0
      %p60 = por %p58, %p59
      %s62 = sadd.s32 %s61, 1
      %p65 = scmp.eq.s32.totalorder %s27, 1
      %p66 = scmp.ne.s32.totalorder %s61, %s63
      %p67 = scmp.eq.s32.totalorder %s27, 0
      %p68 = por %p66, %p67
      %p69 = scmp.ne.s32.totalorder %s61, %s63
      %p70 = scmp.eq.s32.totalorder %s32, 1
      %p71 = por %p69, %p70
      %p72 = scmp.ne.s32.totalorder %s63, %s64
      %p73 = scmp.eq.s32.totalorder %s32, 0
      %p74 = por %p72, %p73
      %p75 = scmp.ne.s32.totalorder %s63, %s64
      %p76 = scmp.eq.s32.totalorder %s33, 1
      %p77 = por %p75, %p76
      %p79 = scmp.ne.s32.totalorder %s64, %s78
      %p80 = scmp.eq.s32.totalorder %s33, 0
      %p81 = por %p79, %p80
      %s83 = sadd.s32 %s82, 1
      %p86 = scmp.eq.s32.totalorder %s27, 1
      %p87 = scmp.ne.s32.totalorder %s82, %s84
      %p88 = scmp.eq.s32.totalorder %s27, 0
      %p89 = por %p87, %p88
      %p90 = scmp.ne.s32.totalorder %s82, %s84
      %p91 = scmp.eq.s32.totalorder %s32, 1
      %p92 = por %p90, %p91
      %p93 = scmp.ne.s32.totalorder %s84, %s85
      %p94 = scmp.eq.s32.totalorder %s32, 0
      %p95 = por %p93, %p94
      %p96 = scmp.ne.s32.totalorder %s84, %s85
      %p97 = scmp.eq.s32.totalorder %s33, 1
      %p98 = por %p96, %p97
      %p100 = scmp.ne.s32.totalorder %s85, %s99
      %p101 = scmp.eq.s32.totalorder %s33, 0
      %p102 = por %p100, %p101
      %s104 = sadd.s32 %s103, 1
      %p107 = scmp.eq.s32.totalorder %s27, 1
      %p108 = scmp.ne.s32.totalorder %s103, %s105
      %p109 = scmp.eq.s32.totalorder %s27, 0
      %p110 = por %p108, %p109
      %p111 = scmp.ne.s32.totalorder %s103, %s105
      %p112 = scmp.eq.s32.totalorder %s32, 1
      %p113 = por %p111, %p112
      %p114 = scmp.ne.s32.totalorder %s105, %s106
      %p115 = scmp.eq.s32.totalorder %s32, 0
      %p116 = por %p114, %p115
      %p117 = scmp.ne.s32.totalorder %s105, %s106
      %p118 = scmp.eq.s32.totalorder %s33, 1
      %p119 = por %p117, %p118
      %p121 = scmp.ne.s32.totalorder %s106, %s120
      %p122 = scmp.eq.s32.totalorder %s33, 0
      %p123 = por %p121, %p122
      %s125 = sadd.s32 %s124, 1
      %p128 = scmp.eq.s32.totalorder %s27, 1
      %p129 = scmp.ne.s32.totalorder %s124, %s126
      %p130 = scmp.eq.s32.totalorder %s27, 0
      %p131 = por %p129, %p130
      %p132 = scmp.ne.s32.totalorder %s124, %s126
      %p133 = scmp.eq.s32.totalorder %s32, 1
      %p134 = por %p132, %p133
      %p135 = scmp.ne.s32.totalorder %s126, %s127
      %p136 = scmp.eq.s32.totalorder %s32, 0
      %p137 = por %p135, %p136
      %p138 = scmp.ne.s32.totalorder %s126, %s127
      %p139 = scmp.eq.s32.totalorder %s33, 1
      %p140 = por %p138, %p139
      %p142 = scmp.ne.s32.totalorder %s127, %s141
      %p143 = scmp.eq.s32.totalorder %s33, 0
      %p144 = por %p142, %p143
      %s146 = sadd.s32 %s145, 1
      %p149 = scmp.eq.s32.totalorder %s27, 1
      %p150 = scmp.ne.s32.totalorder %s145, %s147
      %p151 = scmp.eq.s32.totalorder %s27, 0
      %p152 = por %p150, %p151
      %p153 = scmp.ne.s32.totalorder %s145, %s147
      %p154 = scmp.eq.s32.totalorder %s32, 1
      %p155 = por %p153, %p154
      %p156 = scmp.ne.s32.totalorder %s147, %s148
      %p157 = scmp.eq.s32.totalorder %s32, 0
      %p158 = por %p156, %p157
      %p159 = scmp.ne.s32.totalorder %s147, %s148
      %p160 = scmp.eq.s32.totalorder %s33, 1
      %p161 = por %p159, %p160
      %p163 = scmp.ne.s32.totalorder %s148, %s162
      %p164 = scmp.eq.s32.totalorder %s33, 0
      %p165 = por %p163, %p164
      %s167 = sadd.s32 %s166, 1
      %p170 = scmp.eq.s32.totalorder %s27, 1
      %p171 = scmp.ne.s32.totalorder %s166, %s168
      %p172 = scmp.eq.s32.totalorder %s27, 0
      %p173 = por %p171, %p172
      %p174 = scmp.ne.s32.totalorder %s166, %s168
      %p175 = scmp.eq.s32.totalorder %s32, 1
      %p176 = por %p174, %p175
      %p177 = scmp.ne.s32.totalorder %s168, %s169
      %p178 = scmp.eq.s32.totalorder %s32, 0
      %p179 = por %p177, %p178
      %p180 = scmp.ne.s32.totalorder %s168, %s169
      %p181 = scmp.eq.s32.totalorder %s33, 1
      %p182 = por %p180, %p181
      %p184 = scmp.ne.s32.totalorder %s169, %s183
      %p185 = scmp.eq.s32.totalorder %s33, 0
      %p186 = por %p184, %p185
      %s188 = sadd.s32 %s187, 1
      %p191 = scmp.eq.s32.totalorder %s27, 1
      %p192 = scmp.ne.s32.totalorder %s187, %s189
      %p193 = scmp.eq.s32.totalorder %s27, 0
      %p194 = por %p192, %p193
      %p195 = scmp.ne.s32.totalorder %s187, %s189
      %p196 = scmp.eq.s32.totalorder %s32, 1
      %p197 = por %p195, %p196
      %p198 = scmp.ne.s32.totalorder %s189, %s190
      %p199 = scmp.eq.s32.totalorder %s32, 0
      %p200 = por %p198, %p199
      %p201 = scmp.ne.s32.totalorder %s189, %s190
      %p202 = scmp.eq.s32.totalorder %s33, 1
      %p203 = por %p201, %p202
      %p205 = scmp.ne.s32.totalorder %s190, %s204
      %p206 = scmp.eq.s32.totalorder %s33, 0
      %p207 = por %p205, %p206
      %s209 = sadd.s32 %s208, 1
      %p212 = scmp.eq.s32.totalorder %s27, 1
      %p213 = scmp.ne.s32.totalorder %s208, %s210
      %p214 = scmp.eq.s32.totalorder %s27, 0
      %p215 = por %p213, %p214
      %p216 = scmp.ne.s32.totalorder %s208, %s210
      %p217 = scmp.eq.s32.totalorder %s32, 1
      %p218 = por %p216, %p217
      %p219 = scmp.ne.s32.totalorder %s210, %s211
      %p220 = scmp.eq.s32.totalorder %s32, 0
      %p221 = por %p219, %p220
      %p222 = scmp.ne.s32.totalorder %s210, %s211
      %p223 = scmp.eq.s32.totalorder %s33, 1
      %p224 = por %p222, %p223
      %p226 = scmp.ne.s32.totalorder %s211, %s225
      %p227 = scmp.eq.s32.totalorder %s33, 0
      %p228 = por %p226, %p227
      %s230 = sadd.s32 %s229, 1
      %p233 = scmp.eq.s32.totalorder %s27, 1
      %p234 = scmp.ne.s32.totalorder %s229, %s231
      %p235 = scmp.eq.s32.totalorder %s27, 0
      %p236 = por %p234, %p235
      %p237 = scmp.ne.s32.totalorder %s229, %s231
      %p238 = scmp.eq.s32.totalorder %s32, 1
      %p239 = por %p237, %p238
      %p240 = scmp.ne.s32.totalorder %s231, %s232
      %p241 = scmp.eq.s32.totalorder %s32, 0
      %p242 = por %p240, %p241
      %p243 = scmp.ne.s32.totalorder %s231, %s232
      %p244 = scmp.eq.s32.totalorder %s33, 1
      %p245 = por %p243, %p244
      %p247 = scmp.ne.s32.totalorder %s232, %s246
      %p248 = scmp.eq.s32.totalorder %s33, 0
      %p249 = por %p247, %p248
      %s251 = sadd.s32 %s250, 1
      %p254 = scmp.eq.s32.totalorder %s27, 1
      %p255 = scmp.ne.s32.totalorder %s250, %s252
      %p256 = scmp.eq.s32.totalorder %s27, 0
      %p257 = por %p255, %p256
      %p258 = scmp.ne.s32.totalorder %s250, %s252
      %p259 = scmp.eq.s32.totalorder %s32, 1
      %p260 = por %p258, %p259
      %p261 = scmp.ne.s32.totalorder %s252, %s253
      %p262 = scmp.eq.s32.totalorder %s32, 0
      %p263 = por %p261, %p262
      %p264 = scmp.ne.s32.totalorder %s252, %s253
      %p265 = scmp.eq.s32.totalorder %s33, 1
      %p266 = por %p264, %p265
      %p268 = scmp.ne.s32.totalorder %s253, %s267
      %p269 = scmp.eq.s32.totalorder %s33, 0
      %p270 = por %p268, %p269
      %s272 = sadd.s32 %s271, 1
      %p275 = scmp.eq.s32.totalorder %s27, 1
      %p276 = scmp.ne.s32.totalorder %s271, %s273
      %p277 = scmp.eq.s32.totalorder %s27, 0
      %p278 = por %p276, %p277
      %p279 = scmp.ne.s32.totalorder %s271, %s273
      %p280 = scmp.eq.s32.totalorder %s32, 1
      %p281 = por %p279, %p280
      %p282 = scmp.ne.s32.totalorder %s273, %s274
      %p283 = scmp.eq.s32.totalorder %s32, 0
      %p284 = por %p282, %p283
      %p285 = scmp.ne.s32.totalorder %s273, %s274
      %p286 = scmp.eq.s32.totalorder %s33, 1
      %p287 = por %p285, %p286
      %p289 = scmp.ne.s32.totalorder %s274, %s288
      %p290 = scmp.eq.s32.totalorder %s33, 0
      %p291 = por %p289, %p290
      %s293 = sadd.s32 %s292, 1
      %p296 = scmp.eq.s32.totalorder %s27, 1
      %p297 = scmp.ne.s32.totalorder %s292, %s294
      %p298 = scmp.eq.s32.totalorder %s27, 0
      %p299 = por %p297, %p298
      %p300 = scmp.ne.s32.totalorder %s292, %s294
      %p301 = scmp.eq.s32.totalorder %s32, 1
      %p302 = por %p300, %p301
      %p303 = scmp.ne.s32.totalorder %s294, %s295
      %p304 = scmp.eq.s32.totalorder %s32, 0
      %p305 = por %p303, %p304
      %p306 = scmp.ne.s32.totalorder %s294, %s295
      %p307 = scmp.eq.s32.totalorder %s33, 1
      %p308 = por %p306, %p307
      %p310 = scmp.ne.s32.totalorder %s295, %s309
      %p311 = scmp.eq.s32.totalorder %s33, 0
      %p312 = por %p310, %p311
      %s314 = sadd.s32 %s313, 1
      %p317 = scmp.eq.s32.totalorder %s27, 1
      %p318 = scmp.ne.s32.totalorder %s313, %s315
      %p319 = scmp.eq.s32.totalorder %s27, 0
      %p320 = por %p318, %p319
      %p321 = scmp.ne.s32.totalorder %s313, %s315
      %p322 = scmp.eq.s32.totalorder %s32, 1
      %p323 = por %p321, %p322
      %p324 = scmp.ne.s32.totalorder %s315, %s316
      %p325 = scmp.eq.s32.totalorder %s32, 0
      %p326 = por %p324, %p325
      %p327 = scmp.ne.s32.totalorder %s315, %s316
      %p328 = scmp.eq.s32.totalorder %s33, 1
      %p329 = por %p327, %p328
      %p331 = scmp.ne.s32.totalorder %s316, %s330
      %p332 = scmp.eq.s32.totalorder %s33, 0
      %p333 = por %p331, %p332
      %s335 = sadd.s32 %s334, 1
      %p338 = scmp.eq.s32.totalorder %s27, 1
      %p339 = scmp.ne.s32.totalorder %s334, %s336
      %p340 = scmp.eq.s32.totalorder %s27, 0
      %p341 = por %p339, %p340
      %p342 = scmp.ne.s32.totalorder %s334, %s336
      %p343 = scmp.eq.s32.totalorder %s32, 1
      %p344 = por %p342, %p343
      %p345 = scmp.ne.s32.totalorder %s336, %s337
      %p346 = scmp.eq.s32.totalorder %s32, 0
      %p347 = por %p345, %p346
      %p348 = scmp.ne.s32.totalorder %s336, %s337
      %p349 = scmp.eq.s32.totalorder %s33, 1
      %p350 = por %p348, %p349
      %p352 = scmp.ne.s32.totalorder %s337, %s351
      %p353 = scmp.eq.s32.totalorder %s33, 0
      %p354 = por %p352, %p353
      %s356 = sadd.s32 %s355, 1
      %p359 = scmp.eq.s32.totalorder %s27, 1
      %p360 = scmp.ne.s32.totalorder %s355, %s357
      %p361 = scmp.eq.s32.totalorder %s27, 0
      %p362 = por %p360, %p361
      %p363 = scmp.ne.s32.totalorder %s355, %s357
      %p364 = scmp.eq.s32.totalorder %s32, 1
      %p365 = por %p363, %p364
      %p366 = scmp.ne.s32.totalorder %s357, %s358
      %p367 = scmp.eq.s32.totalorder %s32, 0
      %p368 = por %p366, %p367
      %p369 = scmp.ne.s32.totalorder %s357, %s358
      %p370 = scmp.eq.s32.totalorder %s33, 1
      %p371 = por %p369, %p370
      %p373 = scmp.ne.s32.totalorder %s358, %s372
      %p374 = scmp.eq.s32.totalorder %s33, 0
      %p375 = por %p373, %p374
      %s377 = sadd.s32 %s376, 1
      %p380 = scmp.eq.s32.totalorder %s27, 1
      %p381 = scmp.ne.s32.totalorder %s376, %s378
      %p382 = scmp.eq.s32.totalorder %s27, 0
      %p383 = por %p381, %p382
      %p384 = scmp.ne.s32.totalorder %s376, %s378
      %p385 = scmp.eq.s32.totalorder %s32, 1
      %p386 = por %p384, %p385
      %p387 = scmp.ne.s32.totalorder %s378, %s379
      %p388 = scmp.eq.s32.totalorder %s32, 0
      %p389 = por %p387, %p388
      %p390 = scmp.ne.s32.totalorder %s378, %s379
      %p391 = scmp.eq.s32.totalorder %s33, 1
      %p392 = por %p390, %p391
      %p394 = scmp.ne.s32.totalorder %s379, %s393
      %p395 = scmp.eq.s32.totalorder %s33, 0
      %p396 = por %p394, %p395
      %s397 = ssub.s32 %s27, %s34
      %p398 = scmp.eq.s32.totalorder %s397, 0
      %s400 = sadd.s32 %s399, 1
      %s401 = scalar_select %p398, %s399, %s400
      %p404 = pneg %p398
      %p405 = scmp.eq.s32.totalorder %s27, 1
      %p406 = por %p404, %p405
      %p407 = scmp.ne.s32.totalorder %s399, %s402
      %p408 = scmp.eq.s32.totalorder %s27, 0
      %p409 = por %p407, %p408
      %p410 = scmp.ne.s32.totalorder %s399, %s402
      %p411 = scmp.eq.s32.totalorder %s32, 1
      %p412 = por %p410, %p411
      %p413 = scmp.ne.s32.totalorder %s402, %s403
      %p414 = scmp.eq.s32.totalorder %s32, 0
      %p415 = por %p413, %p414
      %p416 = scmp.ne.s32.totalorder %s402, %s403
      %p417 = scmp.eq.s32.totalorder %s33, 1
      %p418 = por %p416, %p417
      %p420 = scmp.ne.s32.totalorder %s403, %s419
      %p421 = scmp.eq.s32.totalorder %s33, 0
      %p422 = por %p420, %p421
      %p423 = scmp.le.s32.totalorder 1, %s27
      %p424 = scmp.lt.s32.totalorder %s27, 3
      %p425 = pnand %p423, %p424
      %p426 = pneg %p425
      // Predicated region
      $region9: #{tpu_custom_call.1} parent=5 // pred_check
        _
      $region10: #{tpu_custom_call.1} parent=5 // pred_check_branch
        %428 = sbr.rel (%p425) target = $region12
      $region11: #{tpu_custom_call.1} parent=5 // pred_region
        %s429 = ssub.s32 %s27, 1
        // Predicated region
        $region13: #{tpu_custom_call.1} parent=11 // pred_check
          %p430 = pneg %p74
        $region14: #{tpu_custom_call.1} parent=11 // pred_check_branch
          %432 = sbr.rel (%p430) target = $region16
        $region15: #{tpu_custom_call.1} parent=11 // pred_region
          _
        $region16: #{tpu_custom_call.1} parent=11 // pred_fallthru
          _
        // Predicated region
        $region17: #{tpu_custom_call.1} parent=11 // pred_check
          %p433 = pneg %p95
        $region18: #{tpu_custom_call.1} parent=11 // pred_check_branch
          %435 = sbr.rel (%p433) target = $region20
        $region19: #{tpu_custom_call.1} parent=11 // pred_region
          _
        $region20: #{tpu_custom_call.1} parent=11 // pred_fallthru
          _
        // Predicated region
        $region21: #{tpu_custom_call.1} parent=11 // pred_check
          %p436 = pneg %p116
        $region22: #{tpu_custom_call.1} parent=11 // pred_check_branch
          %438 = sbr.rel (%p436) target = $region24
        $region23: #{tpu_custom_call.1} parent=11 // pred_region
          _
        $region24: #{tpu_custom_call.1} parent=11 // pred_fallthru
          _
        // Predicated region
        $region25: #{tpu_custom_call.1} parent=11 // pred_check
          %p439 = pneg %p137
        $region26: #{tpu_custom_call.1} parent=11 // pred_check_branch
          %441 = sbr.rel (%p439) target = $region28
        $region27: #{tpu_custom_call.1} parent=11 // pred_region
          _
        $region28: #{tpu_custom_call.1} parent=11 // pred_fallthru
          _
        // Predicated region
        $region29: #{tpu_custom_call.1} parent=11 // pred_check
          %p442 = pneg %p158
        $region30: #{tpu_custom_call.1} parent=11 // pred_check_branch
          %444 = sbr.rel (%p442) target = $region32
        $region31: #{tpu_custom_call.1} parent=11 // pred_region
          _
        $region32: #{tpu_custom_call.1} parent=11 // pred_fallthru
          _
        // Predicated region
        $region33: #{tpu_custom_call.1} parent=11 // pred_check
          %p445 = pneg %p179
        $region34: #{tpu_custom_call.1} parent=11 // pred_check_branch
          %447 = sbr.rel (%p445) target = $region36
        $region35: #{tpu_custom_call.1} parent=11 // pred_region
          _
        $region36: #{tpu_custom_call.1} parent=11 // pred_fallthru
          _
        // Predicated region
        $region37: #{tpu_custom_call.1} parent=11 // pred_check
          %p448 = pneg %p200
        $region38: #{tpu_custom_call.1} parent=11 // pred_check_branch
          %450 = sbr.rel (%p448) target = $region40
        $region39: #{tpu_custom_call.1} parent=11 // pred_region
          _
        $region40: #{tpu_custom_call.1} parent=11 // pred_fallthru
          _
        // Predicated region
        $region41: #{tpu_custom_call.1} parent=11 // pred_check
          %p451 = pneg %p221
        $region42: #{tpu_custom_call.1} parent=11 // pred_check_branch
          %453 = sbr.rel (%p451) target = $region44
        $region43: #{tpu_custom_call.1} parent=11 // pred_region
          _
        $region44: #{tpu_custom_call.1} parent=11 // pred_fallthru
          _
        // Predicated region
        $region45: #{tpu_custom_call.1} parent=11 // pred_check
          %p454 = pneg %p242
        $region46: #{tpu_custom_call.1} parent=11 // pred_check_branch
          %456 = sbr.rel (%p454) target = $region48
        $region47: #{tpu_custom_call.1} parent=11 // pred_region
          _
        $region48: #{tpu_custom_call.1} parent=11 // pred_fallthru
          _
        // Predicated region
        $region49: #{tpu_custom_call.1} parent=11 // pred_check
          %p457 = pneg %p263
        $region50: #{tpu_custom_call.1} parent=11 // pred_check_branch
          %459 = sbr.rel (%p457) target = $region52
        $region51: #{tpu_custom_call.1} parent=11 // pred_region
          _
        $region52: #{tpu_custom_call.1} parent=11 // pred_fallthru
          _
        // Predicated region
        $region53: #{tpu_custom_call.1} parent=11 // pred_check
          %p460 = pneg %p284
        $region54: #{tpu_custom_call.1} parent=11 // pred_check_branch
          %462 = sbr.rel (%p460) target = $region56
        $region55: #{tpu_custom_call.1} parent=11 // pred_region
          _
        $region56: #{tpu_custom_call.1} parent=11 // pred_fallthru
          _
        // Predicated region
        $region57: #{tpu_custom_call.1} parent=11 // pred_check
          %p463 = pneg %p305
        $region58: #{tpu_custom_call.1} parent=11 // pred_check_branch
          %465 = sbr.rel (%p463) target = $region60
        $region59: #{tpu_custom_call.1} parent=11 // pred_region
          _
        $region60: #{tpu_custom_call.1} parent=11 // pred_fallthru
          _
        // Predicated region
        $region61: #{tpu_custom_call.1} parent=11 // pred_check
          %p466 = pneg %p326
        $region62: #{tpu_custom_call.1} parent=11 // pred_check_branch
          %468 = sbr.rel (%p466) target = $region64
        $region63: #{tpu_custom_call.1} parent=11 // pred_region
          %s470 = ssub.s32 256, 256
          %471 = vsyncadd [#allocation3], %s470
          %s472 = sshll.u32 [#allocation2], 4
          %s473 = int_to_ptr.vmem [resolvable:$true] %s472
          %478 = dma.hbm_to_vmem [thread:$0]  %s13, 256, %s473, [#allocation3], 64, 64, 4
        $region64: #{tpu_custom_call.1} parent=11 // pred_fallthru
          _
        // Predicated region
        $region65: #{tpu_custom_call.1} parent=11 // pred_check
          %p479 = pneg %p347
        $region66: #{tpu_custom_call.1} parent=11 // pred_check_branch
          %481 = sbr.rel (%p479) target = $region68
        $region67: #{tpu_custom_call.1} parent=11 // pred_region
          _
        $region68: #{tpu_custom_call.1} parent=11 // pred_fallthru
          _
        // Predicated region
        $region69: #{tpu_custom_call.1} parent=11 // pred_check
          %p482 = pneg %p368
        $region70: #{tpu_custom_call.1} parent=11 // pred_check_branch
          %484 = sbr.rel (%p482) target = $region72
        $region71: #{tpu_custom_call.1} parent=11 // pred_region
          _
        $region72: #{tpu_custom_call.1} parent=11 // pred_fallthru
          _
        // Predicated region
        $region73: #{tpu_custom_call.1} parent=11 // pred_check
          %p485 = pneg %p389
        $region74: #{tpu_custom_call.1} parent=11 // pred_check_branch
          %487 = sbr.rel (%p485) target = $region76
        $region75: #{tpu_custom_call.1} parent=11 // pred_region
          _
        $region76: #{tpu_custom_call.1} parent=11 // pred_fallthru
          _
      $region12: #{tpu_custom_call.1} parent=5 // pred_fallthru
        _
      %p488 = scmp.lt.s32.totalorder %s27, 2
      // Predicated region
      $region77: #{tpu_custom_call.1} parent=5 // pred_check
        %p489 = pneg %p488
      $region78: #{tpu_custom_call.1} parent=5 // pred_check_branch
        %491 = sbr.rel (%p489) target = $region80
      $region79: #{tpu_custom_call.1} parent=5 // pred_region
        // Predicated region
        $region81: #{tpu_custom_call.1} parent=79 // pred_check
          %p492 = pneg %p47
        $region82: #{tpu_custom_call.1} parent=79 // pred_check_branch
          %494 = sbr.rel (%p492) target = $region84
        $region83: #{tpu_custom_call.1} parent=79 // pred_region
          %p495 = scmp.lt.s32.totalorder %s27, 1
          %s496 = scalar_select %p495, %s27, 1
          %s497 = smul.addr %s496, 8
          %s498 = scalar_lea.vmem %s0, %s497
        $region84: #{tpu_custom_call.1} parent=79 // pred_fallthru
          _
      $region80: #{tpu_custom_call.1} parent=5 // pred_fallthru
        _
      %p499 = scmp.le.s32.totalorder 1, %s27
      %p500 = scmp.lt.s32.totalorder %s27, 3
      %p501 = pnand %p499, %p500
      %p502 = pneg %p501
      // Predicated region
      $region85: #{tpu_custom_call.1} parent=5 // pred_check
        _
      $region86: #{tpu_custom_call.1} parent=5 // pred_check_branch
        %504 = sbr.rel (%p501) target = $region88
      $region87: #{tpu_custom_call.1} parent=5 // pred_region
        %s505 = ssub.s32 %s27, 1
        // Predicated region
        $region89: #{tpu_custom_call.1} parent=87 // pred_check
          %p506 = pneg %p326
        $region90: #{tpu_custom_call.1} parent=87 // pred_check_branch
          %508 = sbr.rel (%p506) target = $region92
        $region91: #{tpu_custom_call.1} parent=87 // pred_region
          %509 = dma.done [#allocation3], 256
        $region92: #{tpu_custom_call.1} parent=87 // pred_fallthru
          _
        %p510 = scmp.lt.s32.totalorder %s32, 1
        %s511 = scalar_select %p510, %s32, 1
        %s512 = smul.addr %s511, 8
        %s513 = scalar_lea.vmem %s0, %s512
        %p514 = pneg %p53
        %p515 = pneg %p50
        %p516 = pneg %p74
        %p517 = pneg %p71
        %p518 = pneg %p95
        %p519 = pneg %p92
        %p520 = pneg %p116
        %p521 = pneg %p113
        %p522 = pneg %p137
        %p523 = pneg %p134
        %p524 = pneg %p158
        %p525 = pneg %p155
        %p526 = pneg %p179
        %p527 = pneg %p176
        %p528 = pneg %p200
        %p529 = pneg %p197
        %p530 = pneg %p221
        %p531 = pneg %p218
        %p532 = pneg %p242
        %p533 = pneg %p239
        %p534 = pneg %p263
        %p535 = pneg %p260
        %p536 = pneg %p284
        %p537 = pneg %p281
        %p538 = pneg %p305
        %p539 = pneg %p302
        %p540 = pneg %p326
        %p541 = pneg %p323
        %p542 = pneg %p347
        %p543 = pneg %p344
        %p544 = pneg %p368
        %p545 = pneg %p365
        %p546 = pneg %p389
        %p547 = pneg %p386
        %p548 = pneg %p415
        %p549 = pneg %p412
        %s550 = sand.u32 %s402, 1
        %s551 = scalar_lea.sflag [#allocation4], %s550
        %s552 = sand.u32 %s402, 1
        %s553 = smul.addr %s552, 8
        %s554 = scalar_lea.vmem [#allocation5], %s553
        %p555 = scmp.lt.s32.totalorder %s32, 1
        %s556 = scalar_select %p555, %s32, 1
        %s557 = smul.addr %s556, 8
        %s558 = scalar_lea.vmem %s0, %s557
        %v560 = vld [vmem:[%s558] sm:$0xff]
        %v561 = vld [vmem:[%s9] sm:$0x1]
        %v562 = vld [vmem:[%s10] sm:$0x1]
        %vm563 = vcmask 261120
        %v564 = vsel %vm563, %v560, 0.0
        %565 = vadd.xlane.f32.xlu0 %v564
        %v566 = vpop.xlane.xlu0 %565
        %v567 = vrcp.pop 32.0
        %v568 = vmul.f32 %v566, %v567
        %v569 = vsub.f32 %v560, %v568
        %v570 = vmul.f32 %v569, %v569
        %v571 = vsel %vm563, %v570, 0.0
        %572 = vadd.xlane.f32.xlu0 %v571
        %v573 = vpop.xlane.xlu0 %572
        %v574 = vmul.f32 %v573, %v567
        %v575 = vadd.f32 %v574, 1e-05
        %v576 = vrsqrt.pop %v575
        %v577 = vmul.f32 %v569, %v576
        %v579 = vlaneseq
        %v580 = vshrl.u32 %v579, 7
        %v581 = vsub.s32 0, %v580
        %v582 = vrot.slane %v561, %v581
        %v584 = vmul.f32 %v577, %v582
        %v586 = vlaneseq
        %v587 = vshrl.u32 %v586, 7
        %v588 = vsub.s32 0, %v587
        %v589 = vrot.slane %v562, %v588
        %v591 = vadd.f32 %v584, %v589
        %v592 = vpack.c.bf16 %v591, %v591
        %v593 = vld [vmem:[%s1] sm:$0xf]
        %v594 = vld [vmem:[%s1 + $0x4] sm:$0xf]
        %v595 = vld [vmem:[%s1 + $0x8] sm:$0xf]
        %v596 = vld [vmem:[%s1 + $0xc] sm:$0xf]
        %v597 = vld [vmem:[%s4] sm:$0x1]
        %v599 = vlaneseq
        %v600 = vshrl.u32 %v599, 7
        %v601 = vsub.s32 0, %v600
        %v602 = vrot.slane %v597, %v601
        %v608 = vunpack.c.l.b16 %v593
        %v609 = vunpack.c.l.b16 %v594
        %v610 = vunpack.c.l.b16 %v595
        %v611 = vunpack.c.l.b16 %v596
        %v612 = vpack.c.b16 %v609, %v608
        %v613 = vpack.c.b16 %v611, %v610
        %v617 = vsel %vm563, %v592, 0
        %619 = vmatprep.subr.bf16.mxu0 0
        %620 = vmatpush1.bf16.msra.mxu0 0
        %621 = vmatprep.subr.bf16.mxu0 0
        %622 = vmatpush1.bf16.msra.mxu0 0
        %623 = vmatprep.subr.bf16.mxu0 0
        %624 = vmatpush1.bf16.msra.mxu0 0
        %625 = vmatprep.subr.bf16.mxu0 0
        %626 = vmatpush1.bf16.msra.mxu0 0
        %627 = vmatprep.subr.bf16.mxu0 0
        %628 = vmatpush1.bf16.msra.mxu0 0
        %629 = vmatprep.subr.bf16.mxu0 0
        %630 = vmatpush1.bf16.msra.mxu0 0
        %631 = vmatprep.subr.bf16.mxu0 0
        %632 = vmatpush1.bf16.msra.mxu0 %v613
        %633 = vmatprep.subr.bf16.mxu0 0
        %634 = vmatpush1.bf16.msra.mxu0 %v612
        %635 = vmatprep.subr.bf16.mxu0 0
        %636 = vmatpush2.bf16.msra.mxu0 0
        %637 = vmatprep.subr.bf16.mxu0 0
        %638 = vmatpush2.bf16.msra.mxu0 0
        %639 = vmatprep.subr.bf16.mxu0 0
        %640 = vmatpush2.bf16.msra.mxu0 0
        %641 = vmatprep.subr.bf16.mxu0 0
        %642 = vmatpush2.bf16.msra.mxu0 0
        %643 = vmatprep.subr.bf16.mxu0 0
        %644 = vmatpush2.bf16.msra.mxu0 0
        %645 = vmatprep.subr.bf16.mxu0 0
        %646 = vmatpush2.bf16.msra.mxu0 0
        %647 = vmatprep.subr.bf16.mxu0 0
        %648 = vmatpush2.bf16.msra.mxu0 0
        %649 = vmatprep.subr.bf16.mxu0 0
        %650 = vmatpush2.bf16.msra.mxu0 0
        %651 = vmatprep.mubr.bf16.mxu0 0
        %652 = vmatmul.mubr.bf16.gmra.mxu0 %v617
        %v653 = vpop.f32.mrf.mxu0
        %v654 = vadd.f32 %v602, %v653
        %v655 = vpop.f32.mrf.mxu0
        %v656 = vpop.f32.mrf.mxu0
        %v657 = vpop.f32.mrf.mxu0
        %658 = vdwg.mxu0
        %v659 = vld [vmem:[%s2] sm:$0xf]
        %v660 = vld [vmem:[%s2 + $0x4] sm:$0xf]
        %v661 = vld [vmem:[%s2 + $0x8] sm:$0xf]
        %v662 = vld [vmem:[%s2 + $0xc] sm:$0xf]
        %v663 = vld [vmem:[%s5] sm:$0x1]
        %v665 = vlaneseq
        %v666 = vshrl.u32 %v665, 7
        %v667 = vsub.s32 0, %v666
        %v668 = vrot.slane %v663, %v667
        %v674 = vunpack.c.l.b16 %v659
        %v675 = vunpack.c.l.b16 %v660
        %v676 = vunpack.c.l.b16 %v661
        %v677 = vunpack.c.l.b16 %v662
        %v678 = vpack.c.b16 %v675, %v674
        %v679 = vpack.c.b16 %v677, %v676
        %682 = vmatprep.subr.bf16.mxu0 0
        %683 = vmatpush1.bf16.msra.mxu0 0
        %684 = vmatprep.subr.bf16.mxu0 0
        %685 = vmatpush1.bf16.msra.mxu0 0
        %686 = vmatprep.subr.bf16.mxu0 0
        %687 = vmatpush1.bf16.msra.mxu0 0
        %688 = vmatprep.subr.bf16.mxu0 0
        %689 = vmatpush1.bf16.msra.mxu0 0
        %690 = vmatprep.subr.bf16.mxu0 0
        %691 = vmatpush1.bf16.msra.mxu0 0
        %692 = vmatprep.subr.bf16.mxu0 0
        %693 = vmatpush1.bf16.msra.mxu0 0
        %694 = vmatprep.subr.bf16.mxu0 0
        %695 = vmatpush1.bf16.msra.mxu0 %v679
        %696 = vmatprep.subr.bf16.mxu0 0
        %697 = vmatpush1.bf16.msra.mxu0 %v678
        %698 = vmatprep.subr.bf16.mxu0 0
        %699 = vmatpush2.bf16.msra.mxu0 0
        %700 = vmatprep.subr.bf16.mxu0 0
        %701 = vmatpush2.bf16.msra.mxu0 0
        %702 = vmatprep.subr.bf16.mxu0 0
        %703 = vmatpush2.bf16.msra.mxu0 0
        %704 = vmatprep.subr.bf16.mxu0 0
        %705 = vmatpush2.bf16.msra.mxu0 0
        %706 = vmatprep.subr.bf16.mxu0 0
        %707 = vmatpush2.bf16.msra.mxu0 0
        %708 = vmatprep.subr.bf16.mxu0 0
        %709 = vmatpush2.bf16.msra.mxu0 0
        %710 = vmatprep.subr.bf16.mxu0 0
        %711 = vmatpush2.bf16.msra.mxu0 0
        %712 = vmatprep.subr.bf16.mxu0 0
        %713 = vmatpush2.bf16.msra.mxu0 0
        %714 = vmatprep.mubr.bf16.mxu0 0
        %715 = vmatmul.mubr.bf16.gmra.mxu0 %v617
        %v716 = vpop.f32.mrf.mxu0
        %v717 = vadd.f32 %v668, %v716
        %v718 = vpop.f32.mrf.mxu0
        %v719 = vpop.f32.mrf.mxu0
        %v720 = vpop.f32.mrf.mxu0
        %721 = vdwg.mxu0
        %v722 = vld [vmem:[%s3] sm:$0xf]
        %v723 = vld [vmem:[%s3 + $0x4] sm:$0xf]
        %v724 = vld [vmem:[%s3 + $0x8] sm:$0xf]
        %v725 = vld [vmem:[%s3 + $0xc] sm:$0xf]
        %v726 = vld [vmem:[%s6] sm:$0x1]
        %v728 = vlaneseq
        %v729 = vshrl.u32 %v728, 7
        %v730 = vsub.s32 0, %v729
        %v731 = vrot.slane %v726, %v730
        %v737 = vunpack.c.l.b16 %v722
        %v738 = vunpack.c.l.b16 %v723
        %v739 = vunpack.c.l.b16 %v724
        %v740 = vunpack.c.l.b16 %v725
        %v741 = vpack.c.b16 %v738, %v737
        %v742 = vpack.c.b16 %v740, %v739
        %745 = vmatprep.subr.bf16.mxu0 0
        %746 = vmatpush1.bf16.msra.mxu0 0
        %747 = vmatprep.subr.bf16.mxu0 0
        %748 = vmatpush1.bf16.msra.mxu0 0
        %749 = vmatprep.subr.bf16.mxu0 0
        %750 = vmatpush1.bf16.msra.mxu0 0
        %751 = vmatprep.subr.bf16.mxu0 0
        %752 = vmatpush1.bf16.msra.mxu0 0
        %753 = vmatprep.subr.bf16.mxu0 0
        %754 = vmatpush1.bf16.msra.mxu0 0
        %755 = vmatprep.subr.bf16.mxu0 0
        %756 = vmatpush1.bf16.msra.mxu0 0
        %757 = vmatprep.subr.bf16.mxu0 0
        %758 = vmatpush1.bf16.msra.mxu0 %v742
        %759 = vmatprep.subr.bf16.mxu0 0
        %760 = vmatpush1.bf16.msra.mxu0 %v741
        %761 = vmatprep.subr.bf16.mxu0 0
        %762 = vmatpush2.bf16.msra.mxu0 0
        %763 = vmatprep.subr.bf16.mxu0 0
        %764 = vmatpush2.bf16.msra.mxu0 0
        %765 = vmatprep.subr.bf16.mxu0 0
        %766 = vmatpush2.bf16.msra.mxu0 0
        %767 = vmatprep.subr.bf16.mxu0 0
        %768 = vmatpush2.bf16.msra.mxu0 0
        %769 = vmatprep.subr.bf16.mxu0 0
        %770 = vmatpush2.bf16.msra.mxu0 0
        %771 = vmatprep.subr.bf16.mxu0 0
        %772 = vmatpush2.bf16.msra.mxu0 0
        %773 = vmatprep.subr.bf16.mxu0 0
        %774 = vmatpush2.bf16.msra.mxu0 0
        %775 = vmatprep.subr.bf16.mxu0 0
        %776 = vmatpush2.bf16.msra.mxu0 0
        %777 = vmatprep.mubr.bf16.mxu0 0
        %778 = vmatmul.mubr.bf16.gmra.mxu0 %v617
        %v779 = vpop.f32.mrf.mxu0
        %v780 = vadd.f32 %v731, %v779
        %v781 = vpop.f32.mrf.mxu0
        %v782 = vpop.f32.mrf.mxu0
        %v783 = vpop.f32.mrf.mxu0
        %784 = vdwg.mxu0
        %786 = vrot.lane.b32.xlu0 %v654, 120
        %v787 = vpop.permute.xlu0 %786
        %789 = vrot.lane.b32.xlu0 %v654, 112
        %v790 = vpop.permute.xlu0 %789
        %792 = vrot.lane.b32.xlu0 %v654, 104
        %v793 = vpop.permute.xlu0 %792
        %v795 = vcombine.low %v654, %v790
        %v796 = vcombine.high %v654, %v790
        %v798 = vunpack.c.l.s4 1983009808
        %v799 = vunpack.c.0.s8 %v798
        %v800 = vlaneseq
        %v801 = vshrl.u32 %v800, 7
        %v802 = vsub.s32 %v799, %v801
        %v803 = vrot.slane %v795, %v802
        %v805 = vunpack.c.l.s4 1983009808
        %v806 = vunpack.c.0.s8 %v805
        %v807 = vlaneseq
        %v808 = vshrl.u32 %v807, 7
        %v809 = vsub.s32 %v806, %v808
        %v810 = vrot.slane %v796, %v809
        %v811 = vcombine.low %v787, %v793
        %v812 = vcombine.high %v787, %v793
        %v814 = vunpack.c.l.s4 1983009808
        %v815 = vunpack.c.0.s8 %v814
        %v816 = vlaneseq
        %v817 = vshrl.u32 %v816, 7
        %v818 = vsub.s32 %v815, %v817
        %v819 = vrot.slane %v811, %v818
        %v821 = vunpack.c.l.s4 1983009808
        %v822 = vunpack.c.0.s8 %v821
        %v823 = vlaneseq
        %v824 = vshrl.u32 %v823, 7
        %v825 = vsub.s32 %v822, %v824
        %v826 = vrot.slane %v812, %v825
        %v827 = vcombine.low %v803, %v819
        %v828 = vcombine.high %v803, %v819
        %v830 = vunpack.c.l.s4 1934713408
        %v831 = vunpack.c.0.s8 %v830
        %v832 = vlaneseq
        %v833 = vshrl.u32 %v832, 7
        %v834 = vsub.s32 %v831, %v833
        %v835 = vrot.slane %v827, %v834
        %v837 = vunpack.c.l.s4 1934713408
        %v838 = vunpack.c.0.s8 %v837
        %v839 = vlaneseq
        %v840 = vshrl.u32 %v839, 7
        %v841 = vsub.s32 %v838, %v840
        %v842 = vrot.slane %v828, %v841
        %v843 = vcombine.low %v810, %v826
        %v844 = vcombine.high %v810, %v826
        %v846 = vunpack.c.l.s4 1934713408
        %v847 = vunpack.c.0.s8 %v846
        %v848 = vlaneseq
        %v849 = vshrl.u32 %v848, 7
        %v850 = vsub.s32 %v847, %v849
        %v851 = vrot.slane %v843, %v850
        %v853 = vunpack.c.l.s4 1934713408
        %v854 = vunpack.c.0.s8 %v853
        %v855 = vlaneseq
        %v856 = vshrl.u32 %v855, 7
        %v857 = vsub.s32 %v854, %v856
        %v858 = vrot.slane %v844, %v857
        %v859 = vcombine.high %v835, 0.0
        %v860 = vcombine.high %v842, 0.0
        %v861 = vcombine.high %v851, 0.0
        %v862 = vcombine.high %v858, 0.0
        %v863 = vcombine.low %v835, %v842
        %v865 = vunpack.c.l.s4 1983009808
        %v866 = vunpack.c.0.s8 %v865
        %v867 = vlaneseq
        %v868 = vshrl.u32 %v867, 7
        %v869 = vsub.s32 %v866, %v868
        %v870 = vrot.slane %v863, %v869
        %v871 = vcombine.low %v859, %v860
        %v873 = vunpack.c.l.s4 1983009808
        %v874 = vunpack.c.0.s8 %v873
        %v875 = vlaneseq
        %v876 = vshrl.u32 %v875, 7
        %v877 = vsub.s32 %v874, %v876
        %v878 = vrot.slane %v871, %v877
        %v879 = vcombine.low %v851, %v858
        %v881 = vunpack.c.l.s4 1983009808
        %v882 = vunpack.c.0.s8 %v881
        %v883 = vlaneseq
        %v884 = vshrl.u32 %v883, 7
        %v885 = vsub.s32 %v882, %v884
        %v886 = vrot.slane %v879, %v885
        %v887 = vcombine.low %v861, %v862
        %v889 = vunpack.c.l.s4 1983009808
        %v890 = vunpack.c.0.s8 %v889
        %v891 = vlaneseq
        %v892 = vshrl.u32 %v891, 7
        %v893 = vsub.s32 %v890, %v892
        %v894 = vrot.slane %v887, %v893
        %v895 = vcombine.low %v870, %v878
        %v896 = vcombine.high %v870, %v878
        %v898 = vunpack.c.l.s4 1934713408
        %v899 = vunpack.c.0.s8 %v898
        %v900 = vlaneseq
        %v901 = vshrl.u32 %v900, 7
        %v902 = vsub.s32 %v899, %v901
        %v903 = vrot.slane %v895, %v902
        %v905 = vunpack.c.l.s4 1934713408
        %v906 = vunpack.c.0.s8 %v905
        %v907 = vlaneseq
        %v908 = vshrl.u32 %v907, 7
        %v909 = vsub.s32 %v906, %v908
        %v910 = vrot.slane %v896, %v909
        %v911 = vcombine.low %v886, %v894
        %v912 = vcombine.high %v886, %v894
        %v914 = vunpack.c.l.s4 1934713408
        %v915 = vunpack.c.0.s8 %v914
        %v916 = vlaneseq
        %v917 = vshrl.u32 %v916, 7
        %v918 = vsub.s32 %v915, %v917
        %v919 = vrot.slane %v911, %v918
        %v921 = vunpack.c.l.s4 1934713408
        %v922 = vunpack.c.0.s8 %v921
        %v923 = vlaneseq
        %v924 = vshrl.u32 %v923, 7
        %v925 = vsub.s32 %v922, %v924
        %v926 = vrot.slane %v912, %v925
        %v927 = vcombine.low %v903, %v919
        %v928 = vcombine.high %v903, %v919
        %v929 = vcombine.low %v910, %v926
        %v930 = vcombine.high %v910, %v926
        %v931 = vpack.c.bf16 %v927, %v927
        %v932 = vpack.c.bf16 %v928, %v928
        %v933 = vpack.c.bf16 %v929, %v929
        %v934 = vpack.c.bf16 %v930, %v930
        %936 = vrot.lane.b32.xlu0 %v717, 120
        %v937 = vpop.permute.xlu0 %936
        %939 = vrot.lane.b32.xlu0 %v717, 112
        %v940 = vpop.permute.xlu0 %939
        %942 = vrot.lane.b32.xlu0 %v717, 104
        %v943 = vpop.permute.xlu0 %942
        %v945 = vcombine.low %v717, %v940
        %v946 = vcombine.high %v717, %v940
        %v948 = vunpack.c.l.s4 1983009808
        %v949 = vunpack.c.0.s8 %v948
        %v950 = vlaneseq
        %v951 = vshrl.u32 %v950, 7
        %v952 = vsub.s32 %v949, %v951
        %v953 = vrot.slane %v945, %v952
        %v955 = vunpack.c.l.s4 1983009808
        %v956 = vunpack.c.0.s8 %v955
        %v957 = vlaneseq
        %v958 = vshrl.u32 %v957, 7
        %v959 = vsub.s32 %v956, %v958
        %v960 = vrot.slane %v946, %v959
        %v961 = vcombine.low %v937, %v943
        %v962 = vcombine.high %v937, %v943
        %v964 = vunpack.c.l.s4 1983009808
        %v965 = vunpack.c.0.s8 %v964
        %v966 = vlaneseq
        %v967 = vshrl.u32 %v966, 7
        %v968 = vsub.s32 %v965, %v967
        %v969 = vrot.slane %v961, %v968
        %v971 = vunpack.c.l.s4 1983009808
        %v972 = vunpack.c.0.s8 %v971
        %v973 = vlaneseq
        %v974 = vshrl.u32 %v973, 7
        %v975 = vsub.s32 %v972, %v974
        %v976 = vrot.slane %v962, %v975
        %v977 = vcombine.low %v953, %v969
        %v978 = vcombine.high %v953, %v969
        %v980 = vunpack.c.l.s4 1934713408
        %v981 = vunpack.c.0.s8 %v980
        %v982 = vlaneseq
        %v983 = vshrl.u32 %v982, 7
        %v984 = vsub.s32 %v981, %v983
        %v985 = vrot.slane %v977, %v984
        %v987 = vunpack.c.l.s4 1934713408
        %v988 = vunpack.c.0.s8 %v987
        %v989 = vlaneseq
        %v990 = vshrl.u32 %v989, 7
        %v991 = vsub.s32 %v988, %v990
        %v992 = vrot.slane %v978, %v991
        %v993 = vcombine.low %v960, %v976
        %v994 = vcombine.high %v960, %v976
        %v996 = vunpack.c.l.s4 1934713408
        %v997 = vunpack.c.0.s8 %v996
        %v998 = vlaneseq
        %v999 = vshrl.u32 %v998, 7
        %v1000 = vsub.s32 %v997, %v999
        %v1001 = vrot.slane %v993, %v1000
        %v1003 = vunpack.c.l.s4 1934713408
        %v1004 = vunpack.c.0.s8 %v1003
        %v1005 = vlaneseq
        %v1006 = vshrl.u32 %v1005, 7
        %v1007 = vsub.s32 %v1004, %v1006
        %v1008 = vrot.slane %v994, %v1007
        %v1009 = vcombine.high %v985, 0.0
        %v1010 = vcombine.high %v992, 0.0
        %v1011 = vcombine.high %v1001, 0.0
        %v1012 = vcombine.high %v1008, 0.0
        %v1013 = vcombine.low %v985, %v992
        %v1015 = vunpack.c.l.s4 1983009808
        %v1016 = vunpack.c.0.s8 %v1015
        %v1017 = vlaneseq
        %v1018 = vshrl.u32 %v1017, 7
        %v1019 = vsub.s32 %v1016, %v1018
        %v1020 = vrot.slane %v1013, %v1019
        %v1021 = vcombine.low %v1009, %v1010
        %v1023 = vunpack.c.l.s4 1983009808
        %v1024 = vunpack.c.0.s8 %v1023
        %v1025 = vlaneseq
        %v1026 = vshrl.u32 %v1025, 7
        %v1027 = vsub.s32 %v1024, %v1026
        %v1028 = vrot.slane %v1021, %v1027
        %v1029 = vcombine.low %v1001, %v1008
        %v1031 = vunpack.c.l.s4 1983009808
        %v1032 = vunpack.c.0.s8 %v1031
        %v1033 = vlaneseq
        %v1034 = vshrl.u32 %v1033, 7
        %v1035 = vsub.s32 %v1032, %v1034
        %v1036 = vrot.slane %v1029, %v1035
        %v1037 = vcombine.low %v1011, %v1012
        %v1039 = vunpack.c.l.s4 1983009808
        %v1040 = vunpack.c.0.s8 %v1039
        %v1041 = vlaneseq
        %v1042 = vshrl.u32 %v1041, 7
        %v1043 = vsub.s32 %v1040, %v1042
        %v1044 = vrot.slane %v1037, %v1043
        %v1045 = vcombine.low %v1020, %v1028
        %v1046 = vcombine.high %v1020, %v1028
        %v1048 = vunpack.c.l.s4 1934713408
        %v1049 = vunpack.c.0.s8 %v1048
        %v1050 = vlaneseq
        %v1051 = vshrl.u32 %v1050, 7
        %v1052 = vsub.s32 %v1049, %v1051
        %v1053 = vrot.slane %v1045, %v1052
        %v1055 = vunpack.c.l.s4 1934713408
        %v1056 = vunpack.c.0.s8 %v1055
        %v1057 = vlaneseq
        %v1058 = vshrl.u32 %v1057, 7
        %v1059 = vsub.s32 %v1056, %v1058
        %v1060 = vrot.slane %v1046, %v1059
        %v1061 = vcombine.low %v1036, %v1044
        %v1062 = vcombine.high %v1036, %v1044
        %v1064 = vunpack.c.l.s4 1934713408
        %v1065 = vunpack.c.0.s8 %v1064
        %v1066 = vlaneseq
        %v1067 = vshrl.u32 %v1066, 7
        %v1068 = vsub.s32 %v1065, %v1067
        %v1069 = vrot.slane %v1061, %v1068
        %v1071 = vunpack.c.l.s4 1934713408
        %v1072 = vunpack.c.0.s8 %v1071
        %v1073 = vlaneseq
        %v1074 = vshrl.u32 %v1073, 7
        %v1075 = vsub.s32 %v1072, %v1074
        %v1076 = vrot.slane %v1062, %v1075
        %v1077 = vcombine.low %v1053, %v1069
        %v1078 = vcombine.high %v1053, %v1069
        %v1079 = vcombine.low %v1060, %v1076
        %v1080 = vcombine.high %v1060, %v1076
        %v1081 = vpack.c.bf16 %v1077, %v1077
        %v1082 = vpack.c.bf16 %v1078, %v1078
        %v1083 = vpack.c.bf16 %v1079, %v1079
        %v1084 = vpack.c.bf16 %v1080, %v1080
        %1086 = vrot.lane.b32.xlu0 %v780, 120
        %v1087 = vpop.permute.xlu0 %1086
        %1089 = vrot.lane.b32.xlu0 %v780, 112
        %v1090 = vpop.permute.xlu0 %1089
        %1092 = vrot.lane.b32.xlu0 %v780, 104
        %v1093 = vpop.permute.xlu0 %1092
        %v1095 = vcombine.low %v780, %v1090
        %v1096 = vcombine.high %v780, %v1090
        %v1098 = vunpack.c.l.s4 1983009808
        %v1099 = vunpack.c.0.s8 %v1098
        %v1100 = vlaneseq
        %v1101 = vshrl.u32 %v1100, 7
        %v1102 = vsub.s32 %v1099, %v1101
        %v1103 = vrot.slane %v1095, %v1102
        %v1105 = vunpack.c.l.s4 1983009808
        %v1106 = vunpack.c.0.s8 %v1105
        %v1107 = vlaneseq
        %v1108 = vshrl.u32 %v1107, 7
        %v1109 = vsub.s32 %v1106, %v1108
        %v1110 = vrot.slane %v1096, %v1109
        %v1111 = vcombine.low %v1087, %v1093
        %v1112 = vcombine.high %v1087, %v1093
        %v1114 = vunpack.c.l.s4 1983009808
        %v1115 = vunpack.c.0.s8 %v1114
        %v1116 = vlaneseq
        %v1117 = vshrl.u32 %v1116, 7
        %v1118 = vsub.s32 %v1115, %v1117
        %v1119 = vrot.slane %v1111, %v1118
        %v1121 = vunpack.c.l.s4 1983009808
        %v1122 = vunpack.c.0.s8 %v1121
        %v1123 = vlaneseq
        %v1124 = vshrl.u32 %v1123, 7
        %v1125 = vsub.s32 %v1122, %v1124
        %v1126 = vrot.slane %v1112, %v1125
        %v1127 = vcombine.low %v1103, %v1119
        %v1128 = vcombine.high %v1103, %v1119
        %v1130 = vunpack.c.l.s4 1934713408
        %v1131 = vunpack.c.0.s8 %v1130
        %v1132 = vlaneseq
        %v1133 = vshrl.u32 %v1132, 7
        %v1134 = vsub.s32 %v1131, %v1133
        %v1135 = vrot.slane %v1127, %v1134
        %v1137 = vunpack.c.l.s4 1934713408
        %v1138 = vunpack.c.0.s8 %v1137
        %v1139 = vlaneseq
        %v1140 = vshrl.u32 %v1139, 7
        %v1141 = vsub.s32 %v1138, %v1140
        %v1142 = vrot.slane %v1128, %v1141
        %v1143 = vcombine.low %v1110, %v1126
        %v1144 = vcombine.high %v1110, %v1126
        %v1146 = vunpack.c.l.s4 1934713408
        %v1147 = vunpack.c.0.s8 %v1146
        %v1148 = vlaneseq
        %v1149 = vshrl.u32 %v1148, 7
        %v1150 = vsub.s32 %v1147, %v1149
        %v1151 = vrot.slane %v1143, %v1150
        %v1153 = vunpack.c.l.s4 1934713408
        %v1154 = vunpack.c.0.s8 %v1153
        %v1155 = vlaneseq
        %v1156 = vshrl.u32 %v1155, 7
        %v1157 = vsub.s32 %v1154, %v1156
        %v1158 = vrot.slane %v1144, %v1157
        %v1159 = vcombine.high %v1135, 0.0
        %v1160 = vcombine.high %v1142, 0.0
        %v1161 = vcombine.high %v1151, 0.0
        %v1162 = vcombine.high %v1158, 0.0
        %v1163 = vcombine.low %v1135, %v1142
        %v1165 = vunpack.c.l.s4 1983009808
        %v1166 = vunpack.c.0.s8 %v1165
        %v1167 = vlaneseq
        %v1168 = vshrl.u32 %v1167, 7
        %v1169 = vsub.s32 %v1166, %v1168
        %v1170 = vrot.slane %v1163, %v1169
        %v1171 = vcombine.low %v1159, %v1160
        %v1173 = vunpack.c.l.s4 1983009808
        %v1174 = vunpack.c.0.s8 %v1173
        %v1175 = vlaneseq
        %v1176 = vshrl.u32 %v1175, 7
        %v1177 = vsub.s32 %v1174, %v1176
        %v1178 = vrot.slane %v1171, %v1177
        %v1179 = vcombine.low %v1151, %v1158
        %v1181 = vunpack.c.l.s4 1983009808
        %v1182 = vunpack.c.0.s8 %v1181
        %v1183 = vlaneseq
        %v1184 = vshrl.u32 %v1183, 7
        %v1185 = vsub.s32 %v1182, %v1184
        %v1186 = vrot.slane %v1179, %v1185
        %v1187 = vcombine.low %v1161, %v1162
        %v1189 = vunpack.c.l.s4 1983009808
        %v1190 = vunpack.c.0.s8 %v1189
        %v1191 = vlaneseq
        %v1192 = vshrl.u32 %v1191, 7
        %v1193 = vsub.s32 %v1190, %v1192
        %v1194 = vrot.slane %v1187, %v1193
        %v1195 = vcombine.low %v1170, %v1178
        %v1196 = vcombine.high %v1170, %v1178
        %v1198 = vunpack.c.l.s4 1934713408
        %v1199 = vunpack.c.0.s8 %v1198
        %v1200 = vlaneseq
        %v1201 = vshrl.u32 %v1200, 7
        %v1202 = vsub.s32 %v1199, %v1201
        %v1203 = vrot.slane %v1195, %v1202
        %v1205 = vunpack.c.l.s4 1934713408
        %v1206 = vunpack.c.0.s8 %v1205
        %v1207 = vlaneseq
        %v1208 = vshrl.u32 %v1207, 7
        %v1209 = vsub.s32 %v1206, %v1208
        %v1210 = vrot.slane %v1196, %v1209
        %v1211 = vcombine.low %v1186, %v1194
        %v1212 = vcombine.high %v1186, %v1194
        %v1214 = vunpack.c.l.s4 1934713408
        %v1215 = vunpack.c.0.s8 %v1214
        %v1216 = vlaneseq
        %v1217 = vshrl.u32 %v1216, 7
        %v1218 = vsub.s32 %v1215, %v1217
        %v1219 = vrot.slane %v1211, %v1218
        %v1221 = vunpack.c.l.s4 1934713408
        %v1222 = vunpack.c.0.s8 %v1221
        %v1223 = vlaneseq
        %v1224 = vshrl.u32 %v1223, 7
        %v1225 = vsub.s32 %v1222, %v1224
        %v1226 = vrot.slane %v1212, %v1225
        %v1227 = vcombine.low %v1203, %v1219
        %v1228 = vcombine.high %v1203, %v1219
        %v1229 = vcombine.low %v1210, %v1226
        %v1230 = vcombine.high %v1210, %v1226
        %v1231 = vpack.c.bf16 %v1227, %v1227
        %v1232 = vpack.c.bf16 %v1228, %v1228
        %v1233 = vpack.c.bf16 %v1229, %v1229
        %v1234 = vpack.c.bf16 %v1230, %v1230
        %vm1235 = vcmask 64512
        %v1237 = vsel %vm1235, %v931, 0
        %v1240 = vsel %vm1235, %v1081, 0
        %1242 = vmatprep.subr.bf16.mxu0 0
        %1243 = vmatpush1.bf16.xpose.msra.mxu0 0
        %1244 = vmatprep.subr.bf16.mxu0 0
        %1245 = vmatpush1.bf16.xpose.msra.mxu0 0
        %1246 = vmatprep.subr.bf16.mxu0 0
        %1247 = vmatpush1.bf16.xpose.msra.mxu0 0
        %1248 = vmatprep.subr.bf16.mxu0 0
        %1249 = vmatpush1.bf16.xpose.msra.mxu0 0
        %1250 = vmatprep.subr.bf16.mxu0 0
        %1251 = vmatpush1.bf16.xpose.msra.mxu0 0
        %1252 = vmatprep.subr.bf16.mxu0 0
        %1253 = vmatpush1.bf16.xpose.msra.mxu0 0
        %1254 = vmatprep.subr.bf16.mxu0 0
        %1255 = vmatpush1.bf16.xpose.msra.mxu0 0
        %1256 = vmatprep.subr.bf16.mxu0 0
        %1257 = vmatpush1.bf16.xpose.msra.mxu0 %v1240
        %1258 = vmatprep.subr.bf16.mxu0 0
        %1259 = vmatpush2.bf16.xpose.msra.mxu0 0
        %1260 = vmatprep.subr.bf16.mxu0 0
        %1261 = vmatpush2.bf16.xpose.msra.mxu0 0
        %1262 = vmatprep.subr.bf16.mxu0 0
        %1263 = vmatpush2.bf16.xpose.msra.mxu0 0
        %1264 = vmatprep.subr.bf16.mxu0 0
        %1265 = vmatpush2.bf16.xpose.msra.mxu0 0
        %1266 = vmatprep.subr.bf16.mxu0 0
        %1267 = vmatpush2.bf16.xpose.msra.mxu0 0
        %1268 = vmatprep.subr.bf16.mxu0 0
        %1269 = vmatpush2.bf16.xpose.msra.mxu0 0
        %1270 = vmatprep.subr.bf16.mxu0 0
        %1271 = vmatpush2.bf16.xpose.msra.mxu0 0
        %1272 = vmatprep.subr.bf16.mxu0 0
        %1273 = vmatpush2.bf16.xpose.msra.mxu0 0
        %1274 = vmatprep.mubr.bf16.mxu0 0
        %1275 = vmatmul.mubr.bf16.gmra.mxu0 %v1237
        %v1276 = vpop.f32.mrf.mxu0
        %v1277 = vadd.f32 0.0, %v1276
        %v1278 = vpop.f32.mrf.mxu0
        %v1279 = vpop.f32.mrf.mxu0
        %v1280 = vpop.f32.mrf.mxu0
        %1281 = vdwg.mxu0
        %v1283 = vsel %vm1235, %v932, 0
        %v1286 = vsel %vm1235, %v1082, 0
        %1288 = vmatprep.subr.bf16.mxu0 0
        %1289 = vmatpush1.bf16.xpose.msra.mxu0 0
        %1290 = vmatprep.subr.bf16.mxu0 0
        %1291 = vmatpush1.bf16.xpose.msra.mxu0 0
        %1292 = vmatprep.subr.bf16.mxu0 0
        %1293 = vmatpush1.bf16.xpose.msra.mxu0 0
        %1294 = vmatprep.subr.bf16.mxu0 0
        %1295 = vmatpush1.bf16.xpose.msra.mxu0 0
        %1296 = vmatprep.subr.bf16.mxu0 0
        %1297 = vmatpush1.bf16.xpose.msra.mxu0 0
        %1298 = vmatprep.subr.bf16.mxu0 0
        %1299 = vmatpush1.bf16.xpose.msra.mxu0 0
        %1300 = vmatprep.subr.bf16.mxu0 0
        %1301 = vmatpush1.bf16.xpose.msra.mxu0 0
        %1302 = vmatprep.subr.bf16.mxu0 0
        %1303 = vmatpush1.bf16.xpose.msra.mxu0 %v1286
        %1304 = vmatprep.subr.bf16.mxu0 0
        %1305 = vmatpush2.bf16.xpose.msra.mxu0 0
        %1306 = vmatprep.subr.bf16.mxu0 0
        %1307 = vmatpush2.bf16.xpose.msra.mxu0 0
        %1308 = vmatprep.subr.bf16.mxu0 0
        %1309 = vmatpush2.bf16.xpose.msra.mxu0 0
        %1310 = vmatprep.subr.bf16.mxu0 0
        %1311 = vmatpush2.bf16.xpose.msra.mxu0 0
        %1312 = vmatprep.subr.bf16.mxu0 0
        %1313 = vmatpush2.bf16.xpose.msra.mxu0 0
        %1314 = vmatprep.subr.bf16.mxu0 0
        %1315 = vmatpush2.bf16.xpose.msra.mxu0 0
        %1316 = vmatprep.subr.bf16.mxu0 0
        %1317 = vmatpush2.bf16.xpose.msra.mxu0 0
        %1318 = vmatprep.subr.bf16.mxu0 0
        %1319 = vmatpush2.bf16.xpose.msra.mxu0 0
        %1320 = vmatprep.mubr.bf16.mxu0 0
        %1321 = vmatmul.mubr.bf16.gmra.mxu0 %v1283
        %v1322 = vpop.f32.mrf.mxu0
        %v1323 = vadd.f32 0.0, %v1322
        %v1324 = vpop.f32.mrf.mxu0
        %v1325 = vpop.f32.mrf.mxu0
        %v1326 = vpop.f32.mrf.mxu0
        %1327 = vdwg.mxu0
        %v1329 = vsel %vm1235, %v933, 0
        %v1332 = vsel %vm1235, %v1083, 0
        %1334 = vmatprep.subr.bf16.mxu0 0
        %1335 = vmatpush1.bf16.xpose.msra.mxu0 0
        %1336 = vmatprep.subr.bf16.mxu0 0
        %1337 = vmatpush1.bf16.xpose.msra.mxu0 0
        %1338 = vmatprep.subr.bf16.mxu0 0
        %1339 = vmatpush1.bf16.xpose.msra.mxu0 0
        %1340 = vmatprep.subr.bf16.mxu0 0
        %1341 = vmatpush1.bf16.xpose.msra.mxu0 0
        %1342 = vmatprep.subr.bf16.mxu0 0
        %1343 = vmatpush1.bf16.xpose.msra.mxu0 0
        %1344 = vmatprep.subr.bf16.mxu0 0
        %1345 = vmatpush1.bf16.xpose.msra.mxu0 0
        %1346 = vmatprep.subr.bf16.mxu0 0
        %1347 = vmatpush1.bf16.xpose.msra.mxu0 0
        %1348 = vmatprep.subr.bf16.mxu0 0
        %1349 = vmatpush1.bf16.xpose.msra.mxu0 %v1332
        %1350 = vmatprep.subr.bf16.mxu0 0
        %1351 = vmatpush2.bf16.xpose.msra.mxu0 0
        %1352 = vmatprep.subr.bf16.mxu0 0
        %1353 = vmatpush2.bf16.xpose.msra.mxu0 0
        %1354 = vmatprep.subr.bf16.mxu0 0
        %1355 = vmatpush2.bf16.xpose.msra.mxu0 0
        %1356 = vmatprep.subr.bf16.mxu0 0
        %1357 = vmatpush2.bf16.xpose.msra.mxu0 0
        %1358 = vmatprep.subr.bf16.mxu0 0
        %1359 = vmatpush2.bf16.xpose.msra.mxu0 0
        %1360 = vmatprep.subr.bf16.mxu0 0
        %1361 = vmatpush2.bf16.xpose.msra.mxu0 0
        %1362 = vmatprep.subr.bf16.mxu0 0
        %1363 = vmatpush2.bf16.xpose.msra.mxu0 0
        %1364 = vmatprep.subr.bf16.mxu0 0
        %1365 = vmatpush2.bf16.xpose.msra.mxu0 0
        %1366 = vmatprep.mubr.bf16.mxu0 0
        %1367 = vmatmul.mubr.bf16.gmra.mxu0 %v1329
        %v1368 = vpop.f32.mrf.mxu0
        %v1369 = vadd.f32 0.0, %v1368
        %v1370 = vpop.f32.mrf.mxu0
        %v1371 = vpop.f32.mrf.mxu0
        %v1372 = vpop.f32.mrf.mxu0
        %1373 = vdwg.mxu0
        %v1375 = vsel %vm1235, %v934, 0
        %v1378 = vsel %vm1235, %v1084, 0
        %1380 = vmatprep.subr.bf16.mxu0 0
        %1381 = vmatpush1.bf16.xpose.msra.mxu0 0
        %1382 = vmatprep.subr.bf16.mxu0 0
        %1383 = vmatpush1.bf16.xpose.msra.mxu0 0
        %1384 = vmatprep.subr.bf16.mxu0 0
        %1385 = vmatpush1.bf16.xpose.msra.mxu0 0
        %1386 = vmatprep.subr.bf16.mxu0 0
        %1387 = vmatpush1.bf16.xpose.msra.mxu0 0
        %1388 = vmatprep.subr.bf16.mxu0 0
        %1389 = vmatpush1.bf16.xpose.msra.mxu0 0
        %1390 = vmatprep.subr.bf16.mxu0 0
        %1391 = vmatpush1.bf16.xpose.msra.mxu0 0
        %1392 = vmatprep.subr.bf16.mxu0 0
        %1393 = vmatpush1.bf16.xpose.msra.mxu0 0
        %1394 = vmatprep.subr.bf16.mxu0 0
        %1395 = vmatpush1.bf16.xpose.msra.mxu0 %v1378
        %1396 = vmatprep.subr.bf16.mxu0 0
        %1397 = vmatpush2.bf16.xpose.msra.mxu0 0
        %1398 = vmatprep.subr.bf16.mxu0 0
        %1399 = vmatpush2.bf16.xpose.msra.mxu0 0
        %1400 = vmatprep.subr.bf16.mxu0 0
        %1401 = vmatpush2.bf16.xpose.msra.mxu0 0
        %1402 = vmatprep.subr.bf16.mxu0 0
        %1403 = vmatpush2.bf16.xpose.msra.mxu0 0
        %1404 = vmatprep.subr.bf16.mxu0 0
        %1405 = vmatpush2.bf16.xpose.msra.mxu0 0
        %1406 = vmatprep.subr.bf16.mxu0 0
        %1407 = vmatpush2.bf16.xpose.msra.mxu0 0
        %1408 = vmatprep.subr.bf16.mxu0 0
        %1409 = vmatpush2.bf16.xpose.msra.mxu0 0
        %1410 = vmatprep.subr.bf16.mxu0 0
        %1411 = vmatpush2.bf16.xpose.msra.mxu0 0
        %1412 = vmatprep.mubr.bf16.mxu0 0
        %1413 = vmatmul.mubr.bf16.gmra.mxu0 %v1375
        %v1414 = vpop.f32.mrf.mxu0
        %v1415 = vadd.f32 0.0, %v1414
        %v1416 = vpop.f32.mrf.mxu0
        %v1417 = vpop.f32.mrf.mxu0
        %v1418 = vpop.f32.mrf.mxu0
        %1419 = vdwg.mxu0
        %v1420 = vsel %vm1235, %v1277, -inf
        %1421 = vmax.xlane.f32.xlu0 %v1420
        %v1422 = vpop.xlane.xlu0 %1421
        %v1423 = vsel %vm1235, %v1323, -inf
        %1424 = vmax.xlane.f32.xlu0 %v1423
        %v1425 = vpop.xlane.xlu0 %1424
        %v1426 = vsel %vm1235, %v1369, -inf
        %1427 = vmax.xlane.f32.xlu0 %v1426
        %v1428 = vpop.xlane.xlu0 %1427
        %v1429 = vsel %vm1235, %v1415, -inf
        %1430 = vmax.xlane.f32.xlu0 %v1429
        %v1431 = vpop.xlane.xlu0 %1430
        %v1432 = vsub.f32 %v1277, %v1422
        %v1433 = vsub.f32 %v1323, %v1425
        %v1434 = vsub.f32 %v1369, %v1428
        %v1435 = vsub.f32 %v1415, %v1431
        %v1436 = vmul.f32 %v1432, 1.442695
        %v1437 = vpow.pop %v1436
        %v1438 = vmul.f32 %v1433, 1.442695
        %v1439 = vpow.pop %v1438
        %v1440 = vmul.f32 %v1434, 1.442695
        %v1441 = vpow.pop %v1440
        %v1442 = vmul.f32 %v1435, 1.442695
        %v1443 = vpow.pop %v1442
        %v1444 = vsel %vm1235, %v1437, 0.0
        %1445 = vadd.xlane.f32.xlu0 %v1444
        %v1446 = vpop.xlane.xlu0 %1445
        %v1447 = vsel %vm1235, %v1439, 0.0
        %1448 = vadd.xlane.f32.xlu0 %v1447
        %v1449 = vpop.xlane.xlu0 %1448
        %v1450 = vsel %vm1235, %v1441, 0.0
        %1451 = vadd.xlane.f32.xlu0 %v1450
        %v1452 = vpop.xlane.xlu0 %1451
        %v1453 = vsel %vm1235, %v1443, 0.0
        %1454 = vadd.xlane.f32.xlu0 %v1453
        %v1455 = vpop.xlane.xlu0 %1454
        %v1456 = vrcp.pop %v1446
        %v1457 = vrcp.pop %v1449
        %v1458 = vrcp.pop %v1452
        %v1459 = vrcp.pop %v1455
        %v1460 = vmul.f32 %v1437, %v1456
        %v1461 = vmul.f32 %v1439, %v1457
        %v1462 = vmul.f32 %v1441, %v1458
        %v1463 = vmul.f32 %v1443, %v1459
        %v1464 = vpack.c.bf16 %v1460, %v1460
        %v1465 = vpack.c.bf16 %v1461, %v1461
        %v1466 = vpack.c.bf16 %v1462, %v1462
        %v1467 = vpack.c.bf16 %v1463, %v1463
        %v1469 = vsel %vm1235, %v1464, 0
        %vm1471 = vcmask 1043456
        %v1473 = vsel %vm1471, %v1231, 0
        %1475 = vmatprep.subr.bf16.mxu0 0
        %1476 = vmatpush1.bf16.msra.mxu0 0
        %1477 = vmatprep.subr.bf16.mxu0 0
        %1478 = vmatpush1.bf16.msra.mxu0 0
        %1479 = vmatprep.subr.bf16.mxu0 0
        %1480 = vmatpush1.bf16.msra.mxu0 0
        %1481 = vmatprep.subr.bf16.mxu0 0
        %1482 = vmatpush1.bf16.msra.mxu0 0
        %1483 = vmatprep.subr.bf16.mxu0 0
        %1484 = vmatpush1.bf16.msra.mxu0 0
        %1485 = vmatprep.subr.bf16.mxu0 0
        %1486 = vmatpush1.bf16.msra.mxu0 0
        %1487 = vmatprep.subr.bf16.mxu0 0
        %1488 = vmatpush1.bf16.msra.mxu0 0
        %1489 = vmatprep.subr.bf16.mxu0 0
        %1490 = vmatpush1.bf16.msra.mxu0 %v1473
        %1491 = vmatprep.subr.bf16.mxu0 0
        %1492 = vmatpush2.bf16.msra.mxu0 0
        %1493 = vmatprep.subr.bf16.mxu0 0
        %1494 = vmatpush2.bf16.msra.mxu0 0
        %1495 = vmatprep.subr.bf16.mxu0 0
        %1496 = vmatpush2.bf16.msra.mxu0 0
        %1497 = vmatprep.subr.bf16.mxu0 0
        %1498 = vmatpush2.bf16.msra.mxu0 0
        %1499 = vmatprep.subr.bf16.mxu0 0
        %1500 = vmatpush2.bf16.msra.mxu0 0
        %1501 = vmatprep.subr.bf16.mxu0 0
        %1502 = vmatpush2.bf16.msra.mxu0 0
        %1503 = vmatprep.subr.bf16.mxu0 0
        %1504 = vmatpush2.bf16.msra.mxu0 0
        %1505 = vmatprep.subr.bf16.mxu0 0
        %1506 = vmatpush2.bf16.msra.mxu0 0
        %1507 = vmatprep.mubr.bf16.mxu0 0
        %1508 = vmatmul.mubr.bf16.gmra.mxu0 %v1469
        %v1509 = vpop.f32.mrf.mxu0
        %v1510 = vadd.f32 0.0, %v1509
        %v1511 = vpop.f32.mrf.mxu0
        %v1512 = vpop.f32.mrf.mxu0
        %v1513 = vpop.f32.mrf.mxu0
        %1514 = vdwg.mxu0
        %v1516 = vsel %vm1235, %v1465, 0
        %v1519 = vsel %vm1471, %v1232, 0
        %1521 = vmatprep.subr.bf16.mxu0 0
        %1522 = vmatpush1.bf16.msra.mxu0 0
        %1523 = vmatprep.subr.bf16.mxu0 0
        %1524 = vmatpush1.bf16.msra.mxu0 0
        %1525 = vmatprep.subr.bf16.mxu0 0
        %1526 = vmatpush1.bf16.msra.mxu0 0
        %1527 = vmatprep.subr.bf16.mxu0 0
        %1528 = vmatpush1.bf16.msra.mxu0 0
        %1529 = vmatprep.subr.bf16.mxu0 0
        %1530 = vmatpush1.bf16.msra.mxu0 0
        %1531 = vmatprep.subr.bf16.mxu0 0
        %1532 = vmatpush1.bf16.msra.mxu0 0
        %1533 = vmatprep.subr.bf16.mxu0 0
        %1534 = vmatpush1.bf16.msra.mxu0 0
        %1535 = vmatprep.subr.bf16.mxu0 0
        %1536 = vmatpush1.bf16.msra.mxu0 %v1519
        %1537 = vmatprep.subr.bf16.mxu0 0
        %1538 = vmatpush2.bf16.msra.mxu0 0
        %1539 = vmatprep.subr.bf16.mxu0 0
        %1540 = vmatpush2.bf16.msra.mxu0 0
        %1541 = vmatprep.subr.bf16.mxu0 0
        %1542 = vmatpush2.bf16.msra.mxu0 0
        %1543 = vmatprep.subr.bf16.mxu0 0
        %1544 = vmatpush2.bf16.msra.mxu0 0
        %1545 = vmatprep.subr.bf16.mxu0 0
        %1546 = vmatpush2.bf16.msra.mxu0 0
        %1547 = vmatprep.subr.bf16.mxu0 0
        %1548 = vmatpush2.bf16.msra.mxu0 0
        %1549 = vmatprep.subr.bf16.mxu0 0
        %1550 = vmatpush2.bf16.msra.mxu0 0
        %1551 = vmatprep.subr.bf16.mxu0 0
        %1552 = vmatpush2.bf16.msra.mxu0 0
        %1553 = vmatprep.mubr.bf16.mxu0 0
        %1554 = vmatmul.mubr.bf16.gmra.mxu0 %v1516
        %v1555 = vpop.f32.mrf.mxu0
        %v1556 = vadd.f32 0.0, %v1555
        %v1557 = vpop.f32.mrf.mxu0
        %v1558 = vpop.f32.mrf.mxu0
        %v1559 = vpop.f32.mrf.mxu0
        %1560 = vdwg.mxu0
        %v1562 = vsel %vm1235, %v1466, 0
        %v1565 = vsel %vm1471, %v1233, 0
        %1567 = vmatprep.subr.bf16.mxu0 0
        %1568 = vmatpush1.bf16.msra.mxu0 0
        %1569 = vmatprep.subr.bf16.mxu0 0
        %1570 = vmatpush1.bf16.msra.mxu0 0
        %1571 = vmatprep.subr.bf16.mxu0 0
        %1572 = vmatpush1.bf16.msra.mxu0 0
        %1573 = vmatprep.subr.bf16.mxu0 0
        %1574 = vmatpush1.bf16.msra.mxu0 0
        %1575 = vmatprep.subr.bf16.mxu0 0
        %1576 = vmatpush1.bf16.msra.mxu0 0
        %1577 = vmatprep.subr.bf16.mxu0 0
        %1578 = vmatpush1.bf16.msra.mxu0 0
        %1579 = vmatprep.subr.bf16.mxu0 0
        %1580 = vmatpush1.bf16.msra.mxu0 0
        %1581 = vmatprep.subr.bf16.mxu0 0
        %1582 = vmatpush1.bf16.msra.mxu0 %v1565
        %1583 = vmatprep.subr.bf16.mxu0 0
        %1584 = vmatpush2.bf16.msra.mxu0 0
        %1585 = vmatprep.subr.bf16.mxu0 0
        %1586 = vmatpush2.bf16.msra.mxu0 0
        %1587 = vmatprep.subr.bf16.mxu0 0
        %1588 = vmatpush2.bf16.msra.mxu0 0
        %1589 = vmatprep.subr.bf16.mxu0 0
        %1590 = vmatpush2.bf16.msra.mxu0 0
        %1591 = vmatprep.subr.bf16.mxu0 0
        %1592 = vmatpush2.bf16.msra.mxu0 0
        %1593 = vmatprep.subr.bf16.mxu0 0
        %1594 = vmatpush2.bf16.msra.mxu0 0
        %1595 = vmatprep.subr.bf16.mxu0 0
        %1596 = vmatpush2.bf16.msra.mxu0 0
        %1597 = vmatprep.subr.bf16.mxu0 0
        %1598 = vmatpush2.bf16.msra.mxu0 0
        %1599 = vmatprep.mubr.bf16.mxu0 0
        %1600 = vmatmul.mubr.bf16.gmra.mxu0 %v1562
        %v1601 = vpop.f32.mrf.mxu0
        %v1602 = vadd.f32 0.0, %v1601
        %v1603 = vpop.f32.mrf.mxu0
        %v1604 = vpop.f32.mrf.mxu0
        %v1605 = vpop.f32.mrf.mxu0
        %1606 = vdwg.mxu0
        %v1608 = vsel %vm1235, %v1467, 0
        %v1611 = vsel %vm1471, %v1234, 0
        %1613 = vmatprep.subr.bf16.mxu0 0
        %1614 = vmatpush1.bf16.msra.mxu0 0
        %1615 = vmatprep.subr.bf16.mxu0 0
        %1616 = vmatpush1.bf16.msra.mxu0 0
        %1617 = vmatprep.subr.bf16.mxu0 0
        %1618 = vmatpush1.bf16.msra.mxu0 0
        %1619 = vmatprep.subr.bf16.mxu0 0
        %1620 = vmatpush1.bf16.msra.mxu0 0
        %1621 = vmatprep.subr.bf16.mxu0 0
        %1622 = vmatpush1.bf16.msra.mxu0 0
        %1623 = vmatprep.subr.bf16.mxu0 0
        %1624 = vmatpush1.bf16.msra.mxu0 0
        %1625 = vmatprep.subr.bf16.mxu0 0
        %1626 = vmatpush1.bf16.msra.mxu0 0
        %1627 = vmatprep.subr.bf16.mxu0 0
        %1628 = vmatpush1.bf16.msra.mxu0 %v1611
        %1629 = vmatprep.subr.bf16.mxu0 0
        %1630 = vmatpush2.bf16.msra.mxu0 0
        %1631 = vmatprep.subr.bf16.mxu0 0
        %1632 = vmatpush2.bf16.msra.mxu0 0
        %1633 = vmatprep.subr.bf16.mxu0 0
        %1634 = vmatpush2.bf16.msra.mxu0 0
        %1635 = vmatprep.subr.bf16.mxu0 0
        %1636 = vmatpush2.bf16.msra.mxu0 0
        %1637 = vmatprep.subr.bf16.mxu0 0
        %1638 = vmatpush2.bf16.msra.mxu0 0
        %1639 = vmatprep.subr.bf16.mxu0 0
        %1640 = vmatpush2.bf16.msra.mxu0 0
        %1641 = vmatprep.subr.bf16.mxu0 0
        %1642 = vmatpush2.bf16.msra.mxu0 0
        %1643 = vmatprep.subr.bf16.mxu0 0
        %1644 = vmatpush2.bf16.msra.mxu0 0
        %1645 = vmatprep.mubr.bf16.mxu0 0
        %1646 = vmatmul.mubr.bf16.gmra.mxu0 %v1608
        %v1647 = vpop.f32.mrf.mxu0
        %v1648 = vadd.f32 0.0, %v1647
        %v1649 = vpop.f32.mrf.mxu0
        %v1650 = vpop.f32.mrf.mxu0
        %v1651 = vpop.f32.mrf.mxu0
        %1652 = vdwg.mxu0
        %v1653 = vcombine.low %v1510, %v1602
        %v1654 = vcombine.high %v1510, %v1602
        %v1656 = vunpack.c.l.s4 1983009808
        %v1657 = vunpack.c.0.s8 %v1656
        %v1658 = vlaneseq
        %v1659 = vshrl.u32 %v1658, 7
        %v1660 = vsub.s32 %v1657, %v1659
        %v1661 = vrot.slane %v1653, %v1660
        %v1663 = vunpack.c.l.s4 1983009808
        %v1664 = vunpack.c.0.s8 %v1663
        %v1665 = vlaneseq
        %v1666 = vshrl.u32 %v1665, 7
        %v1667 = vsub.s32 %v1664, %v1666
        %v1668 = vrot.slane %v1654, %v1667
        %v1669 = vcombine.low %v1556, %v1648
        %v1670 = vcombine.high %v1556, %v1648
        %v1672 = vunpack.c.l.s4 1983009808
        %v1673 = vunpack.c.0.s8 %v1672
        %v1674 = vlaneseq
        %v1675 = vshrl.u32 %v1674, 7
        %v1676 = vsub.s32 %v1673, %v1675
        %v1677 = vrot.slane %v1669, %v1676
        %v1679 = vunpack.c.l.s4 1983009808
        %v1680 = vunpack.c.0.s8 %v1679
        %v1681 = vlaneseq
        %v1682 = vshrl.u32 %v1681, 7
        %v1683 = vsub.s32 %v1680, %v1682
        %v1684 = vrot.slane %v1670, %v1683
        %v1685 = vcombine.low %v1661, %v1677
        %v1686 = vcombine.high %v1661, %v1677
        %v1688 = vunpack.c.l.s4 1934713408
        %v1689 = vunpack.c.0.s8 %v1688
        %v1690 = vlaneseq
        %v1691 = vshrl.u32 %v1690, 7
        %v1692 = vsub.s32 %v1689, %v1691
        %v1693 = vrot.slane %v1685, %v1692
        %v1695 = vunpack.c.l.s4 1934713408
        %v1696 = vunpack.c.0.s8 %v1695
        %v1697 = vlaneseq
        %v1698 = vshrl.u32 %v1697, 7
        %v1699 = vsub.s32 %v1696, %v1698
        %v1700 = vrot.slane %v1686, %v1699
        %v1701 = vcombine.low %v1668, %v1684
        %v1702 = vcombine.high %v1668, %v1684
        %v1704 = vunpack.c.l.s4 1934713408
        %v1705 = vunpack.c.0.s8 %v1704
        %v1706 = vlaneseq
        %v1707 = vshrl.u32 %v1706, 7
        %v1708 = vsub.s32 %v1705, %v1707
        %v1709 = vrot.slane %v1701, %v1708
        %v1711 = vunpack.c.l.s4 1934713408
        %v1712 = vunpack.c.0.s8 %v1711
        %v1713 = vlaneseq
        %v1714 = vshrl.u32 %v1713, 7
        %v1715 = vsub.s32 %v1712, %v1714
        %v1716 = vrot.slane %v1702, %v1715
        %v1717 = vcombine.high %v1693, 0.0
        %v1718 = vcombine.high %v1700, 0.0
        %v1719 = vcombine.high %v1709, 0.0
        %v1720 = vcombine.high %v1716, 0.0
        %v1721 = vcombine.low %v1693, %v1700
        %v1723 = vunpack.c.l.s4 1983009808
        %v1724 = vunpack.c.0.s8 %v1723
        %v1725 = vlaneseq
        %v1726 = vshrl.u32 %v1725, 7
        %v1727 = vsub.s32 %v1724, %v1726
        %v1728 = vrot.slane %v1721, %v1727
        %v1729 = vcombine.low %v1717, %v1718
        %v1731 = vunpack.c.l.s4 1983009808
        %v1732 = vunpack.c.0.s8 %v1731
        %v1733 = vlaneseq
        %v1734 = vshrl.u32 %v1733, 7
        %v1735 = vsub.s32 %v1732, %v1734
        %v1736 = vrot.slane %v1729, %v1735
        %v1737 = vcombine.low %v1709, %v1716
        %v1739 = vunpack.c.l.s4 1983009808
        %v1740 = vunpack.c.0.s8 %v1739
        %v1741 = vlaneseq
        %v1742 = vshrl.u32 %v1741, 7
        %v1743 = vsub.s32 %v1740, %v1742
        %v1744 = vrot.slane %v1737, %v1743
        %v1745 = vcombine.low %v1719, %v1720
        %v1747 = vunpack.c.l.s4 1983009808
        %v1748 = vunpack.c.0.s8 %v1747
        %v1749 = vlaneseq
        %v1750 = vshrl.u32 %v1749, 7
        %v1751 = vsub.s32 %v1748, %v1750
        %v1752 = vrot.slane %v1745, %v1751
        %v1753 = vcombine.low %v1728, %v1736
        %v1754 = vcombine.high %v1728, %v1736
        %v1756 = vunpack.c.l.s4 1934713408
        %v1757 = vunpack.c.0.s8 %v1756
        %v1758 = vlaneseq
        %v1759 = vshrl.u32 %v1758, 7
        %v1760 = vsub.s32 %v1757, %v1759
        %v1761 = vrot.slane %v1753, %v1760
        %v1763 = vunpack.c.l.s4 1934713408
        %v1764 = vunpack.c.0.s8 %v1763
        %v1765 = vlaneseq
        %v1766 = vshrl.u32 %v1765, 7
        %v1767 = vsub.s32 %v1764, %v1766
        %v1768 = vrot.slane %v1754, %v1767
        %v1769 = vcombine.low %v1744, %v1752
        %v1770 = vcombine.high %v1744, %v1752
        %v1772 = vunpack.c.l.s4 1934713408
        %v1773 = vunpack.c.0.s8 %v1772
        %v1774 = vlaneseq
        %v1775 = vshrl.u32 %v1774, 7
        %v1776 = vsub.s32 %v1773, %v1775
        %v1777 = vrot.slane %v1769, %v1776
        %v1779 = vunpack.c.l.s4 1934713408
        %v1780 = vunpack.c.0.s8 %v1779
        %v1781 = vlaneseq
        %v1782 = vshrl.u32 %v1781, 7
        %v1783 = vsub.s32 %v1780, %v1782
        %v1784 = vrot.slane %v1770, %v1783
        %v1785 = vcombine.low %v1761, %v1777
        %v1786 = vcombine.high %v1761, %v1777
        %v1787 = vcombine.low %v1768, %v1784
        %v1788 = vcombine.high %v1768, %v1784
        %1790 = vrot.lane.b32.xlu0 %v1786, 8
        %v1791 = vpop.permute.xlu0 %1790
        %1794 = vrot.lane.b32.xlu0 %v1787, 16
        %v1795 = vpop.permute.xlu0 %1794
        %1798 = vrot.lane.b32.xlu0 %v1788, 24
        %v1799 = vpop.permute.xlu0 %1798
        %v1801 = vsel %vm1235, %v1785, %v1791
        %vm1802 = vcmask 130048
        %v1803 = vsel %vm1802, %v1801, %v1795
        %vm1804 = vcmask 195584
        %v1805 = vsel %vm1804, %v1803, %v1799
        %v1806 = vpack.c.bf16 %v1805, %v1805
        %v1807 = vld [vmem:[%s7] sm:$0xf]
        %v1808 = vld [vmem:[%s7 + $0x4] sm:$0xf]
        %v1809 = vld [vmem:[%s7 + $0x8] sm:$0xf]
        %v1810 = vld [vmem:[%s7 + $0xc] sm:$0xf]
        %v1811 = vld [vmem:[%s8] sm:$0x1]
        %v1813 = vlaneseq
        %v1814 = vshrl.u32 %v1813, 7
        %v1815 = vsub.s32 0, %v1814
        %v1816 = vrot.slane %v1811, %v1815
        %v1822 = vunpack.c.l.b16 %v1807
        %v1823 = vunpack.c.l.b16 %v1808
        %v1824 = vunpack.c.l.b16 %v1809
        %v1825 = vunpack.c.l.b16 %v1810
        %v1826 = vpack.c.b16 %v1823, %v1822
        %v1827 = vpack.c.b16 %v1825, %v1824
        %v1831 = vsel %vm563, %v1806, 0
        %1833 = vmatprep.subr.bf16.mxu0 0
        %1834 = vmatpush1.bf16.msra.mxu0 0
        %1835 = vmatprep.subr.bf16.mxu0 0
        %1836 = vmatpush1.bf16.msra.mxu0 0
        %1837 = vmatprep.subr.bf16.mxu0 0
        %1838 = vmatpush1.bf16.msra.mxu0 0
        %1839 = vmatprep.subr.bf16.mxu0 0
        %1840 = vmatpush1.bf16.msra.mxu0 0
        %1841 = vmatprep.subr.bf16.mxu0 0
        %1842 = vmatpush1.bf16.msra.mxu0 0
        %1843 = vmatprep.subr.bf16.mxu0 0
        %1844 = vmatpush1.bf16.msra.mxu0 0
        %1845 = vmatprep.subr.bf16.mxu0 0
        %1846 = vmatpush1.bf16.msra.mxu0 %v1827
        %1847 = vmatprep.subr.bf16.mxu0 0
        %1848 = vmatpush1.bf16.msra.mxu0 %v1826
        %1849 = vmatprep.subr.bf16.mxu0 0
        %1850 = vmatpush2.bf16.msra.mxu0 0
        %1851 = vmatprep.subr.bf16.mxu0 0
        %1852 = vmatpush2.bf16.msra.mxu0 0
        %1853 = vmatprep.subr.bf16.mxu0 0
        %1854 = vmatpush2.bf16.msra.mxu0 0
        %1855 = vmatprep.subr.bf16.mxu0 0
        %1856 = vmatpush2.bf16.msra.mxu0 0
        %1857 = vmatprep.subr.bf16.mxu0 0
        %1858 = vmatpush2.bf16.msra.mxu0 0
        %1859 = vmatprep.subr.bf16.mxu0 0
        %1860 = vmatpush2.bf16.msra.mxu0 0
        %1861 = vmatprep.subr.bf16.mxu0 0
        %1862 = vmatpush2.bf16.msra.mxu0 0
        %1863 = vmatprep.subr.bf16.mxu0 0
        %1864 = vmatpush2.bf16.msra.mxu0 0
        %1865 = vmatprep.mubr.bf16.mxu0 0
        %1866 = vmatmul.mubr.bf16.gmra.mxu0 %v1831
        %v1867 = vpop.f32.mrf.mxu0
        %v1868 = vadd.f32 %v1816, %v1867
        %v1869 = vpop.f32.mrf.mxu0
        %v1870 = vpop.f32.mrf.mxu0
        %v1871 = vpop.f32.mrf.mxu0
        %1872 = vdwg.mxu0
        %v1873 = vadd.f32 %v560, %v1868
        %v1874 = vld [vmem:[%s11] sm:$0x1]
        %v1875 = vld [vmem:[%s12] sm:$0x1]
        %v1876 = vsel %vm563, %v1873, 0.0
        %1877 = vadd.xlane.f32.xlu0 %v1876
        %v1878 = vpop.xlane.xlu0 %1877
        %v1879 = vmul.f32 %v1878, %v567
        %v1880 = vsub.f32 %v1873, %v1879
        %v1881 = vmul.f32 %v1880, %v1880
        %v1882 = vsel %vm563, %v1881, 0.0
        %1883 = vadd.xlane.f32.xlu0 %v1882
        %v1884 = vpop.xlane.xlu0 %1883
        %v1885 = vmul.f32 %v1884, %v567
        %v1886 = vadd.f32 %v1885, 1e-05
        %v1887 = vrsqrt.pop %v1886
        %v1888 = vmul.f32 %v1880, %v1887
        %v1890 = vlaneseq
        %v1891 = vshrl.u32 %v1890, 7
        %v1892 = vsub.s32 0, %v1891
        %v1893 = vrot.slane %v1874, %v1892
        %v1895 = vmul.f32 %v1888, %v1893
        %v1897 = vlaneseq
        %v1898 = vshrl.u32 %v1897, 7
        %v1899 = vsub.s32 0, %v1898
        %v1900 = vrot.slane %v1875, %v1899
        %v1902 = vadd.f32 %v1895, %v1900
        %v1903 = vpack.c.bf16 %v1902, %v1902
        %v1904 = vld [vmem:[#allocation2] sm:$0xf]
        %v1905 = vld [vmem:[#allocation2 + $0x4] sm:$0xf]
        %v1906 = vld [vmem:[#allocation2 + $0x8] sm:$0xf]
        %v1907 = vld [vmem:[#allocation2 + $0xc] sm:$0xf]
        %v1908 = vld [vmem:[%s14] sm:$0x1]
        %v1910 = vlaneseq
        %v1911 = vshrl.u32 %v1910, 7
        %v1912 = vsub.s32 0, %v1911
        %v1913 = vrot.slane %v1908, %v1912
        %v1919 = vunpack.c.l.b16 %v1904
        %v1920 = vunpack.c.l.b16 %v1905
        %v1921 = vunpack.c.l.b16 %v1906
        %v1922 = vunpack.c.l.b16 %v1907
        %v1923 = vpack.c.b16 %v1920, %v1919
        %v1924 = vpack.c.b16 %v1922, %v1921
        %v1928 = vsel %vm563, %v1903, 0
        %1930 = vmatprep.subr.bf16.mxu0 0
        %1931 = vmatpush1.bf16.msra.mxu0 0
        %1932 = vmatprep.subr.bf16.mxu0 0
        %1933 = vmatpush1.bf16.msra.mxu0 0
        %1934 = vmatprep.subr.bf16.mxu0 0
        %1935 = vmatpush1.bf16.msra.mxu0 0
        %1936 = vmatprep.subr.bf16.mxu0 0
        %1937 = vmatpush1.bf16.msra.mxu0 0
        %1938 = vmatprep.subr.bf16.mxu0 0
        %1939 = vmatpush1.bf16.msra.mxu0 0
        %1940 = vmatprep.subr.bf16.mxu0 0
        %1941 = vmatpush1.bf16.msra.mxu0 0
        %1942 = vmatprep.subr.bf16.mxu0 0
        %1943 = vmatpush1.bf16.msra.mxu0 %v1924
        %1944 = vmatprep.subr.bf16.mxu0 0
        %1945 = vmatpush1.bf16.msra.mxu0 %v1923
        %1946 = vmatprep.subr.bf16.mxu0 0
        %1947 = vmatpush2.bf16.msra.mxu0 0
        %1948 = vmatprep.subr.bf16.mxu0 0
        %1949 = vmatpush2.bf16.msra.mxu0 0
        %1950 = vmatprep.subr.bf16.mxu0 0
        %1951 = vmatpush2.bf16.msra.mxu0 0
        %1952 = vmatprep.subr.bf16.mxu0 0
        %1953 = vmatpush2.bf16.msra.mxu0 0
        %1954 = vmatprep.subr.bf16.mxu0 0
        %1955 = vmatpush2.bf16.msra.mxu0 0
        %1956 = vmatprep.subr.bf16.mxu0 0
        %1957 = vmatpush2.bf16.msra.mxu0 0
        %1958 = vmatprep.subr.bf16.mxu0 0
        %1959 = vmatpush2.bf16.msra.mxu0 0
        %1960 = vmatprep.subr.bf16.mxu0 0
        %1961 = vmatpush2.bf16.msra.mxu0 0
        %1962 = vmatprep.mubr.bf16.mxu0 0
        %1963 = vmatmul.mubr.bf16.gmra.mxu0 %v1928
        %v1964 = vpop.f32.mrf.mxu0
        %v1965 = vadd.f32 %v1913, %v1964
        %v1966 = vpop.f32.mrf.mxu0
        %v1967 = vpop.f32.mrf.mxu0
        %v1968 = vpop.f32.mrf.mxu0
        %1969 = vdwg.mxu0
        %v1970 = vmul.f32 %v1965, 1.702
        %v1971 = vxor.u32 %v1970, 2147483648
        %v1972 = vmul.f32 %v1971, 1.442695
        %v1973 = vpow.pop %v1972
        %v1974 = vadd.f32 %v1973, 1.0
        %v1975 = vrcp.pop %v1974
        %v1976 = vmul.f32 1.0, %v1975
        %v1977 = vmul.f32 %v1965, %v1976
        %v1978 = vpack.c.bf16 %v1977, %v1977
        %v1979 = vld [vmem:[%s15] sm:$0xf]
        %v1980 = vld [vmem:[%s15 + $0x4] sm:$0xf]
        %v1981 = vld [vmem:[%s15 + $0x8] sm:$0xf]
        %v1982 = vld [vmem:[%s15 + $0xc] sm:$0xf]
        %v1983 = vld [vmem:[%s15 + $0x10] sm:$0xf]
        %v1984 = vld [vmem:[%s15 + $0x14] sm:$0xf]
        %v1985 = vld [vmem:[%s15 + $0x18] sm:$0xf]
        %v1986 = vld [vmem:[%s15 + $0x1c] sm:$0xf]
        %v1987 = vld [vmem:[%s15 + $0x20] sm:$0xf]
        %v1988 = vld [vmem:[%s15 + $0x24] sm:$0xf]
        %v1989 = vld [vmem:[%s15 + $0x28] sm:$0xf]
        %v1990 = vld [vmem:[%s15 + $0x2c] sm:$0xf]
        %v1991 = vld [vmem:[%s15 + $0x30] sm:$0xf]
        %v1992 = vld [vmem:[%s15 + $0x34] sm:$0xf]
        %v1993 = vld [vmem:[%s15 + $0x38] sm:$0xf]
        %v1994 = vld [vmem:[%s15 + $0x3c] sm:$0xf]
        %v1995 = vld [vmem:[%s16] sm:$0x1]
        %v1997 = vlaneseq
        %v1998 = vshrl.u32 %v1997, 7
        %v1999 = vsub.s32 0, %v1998
        %v2000 = vrot.slane %v1995, %v1999
        %v2018 = vunpack.c.l.b16 %v1979
        %v2019 = vunpack.c.l.b16 %v1980
        %v2020 = vunpack.c.l.b16 %v1981
        %v2021 = vunpack.c.l.b16 %v1982
        %v2022 = vunpack.c.l.b16 %v1983
        %v2023 = vunpack.c.l.b16 %v1984
        %v2024 = vunpack.c.l.b16 %v1985
        %v2025 = vunpack.c.l.b16 %v1986
        %v2026 = vunpack.c.l.b16 %v1987
        %v2027 = vunpack.c.l.b16 %v1988
        %v2028 = vunpack.c.l.b16 %v1989
        %v2029 = vunpack.c.l.b16 %v1990
        %v2030 = vunpack.c.l.b16 %v1991
        %v2031 = vunpack.c.l.b16 %v1992
        %v2032 = vunpack.c.l.b16 %v1993
        %v2033 = vunpack.c.l.b16 %v1994
        %v2034 = vpack.c.b16 %v2019, %v2018
        %v2035 = vpack.c.b16 %v2021, %v2020
        %v2036 = vpack.c.b16 %v2023, %v2022
        %v2037 = vpack.c.b16 %v2025, %v2024
        %v2038 = vpack.c.b16 %v2027, %v2026
        %v2039 = vpack.c.b16 %v2029, %v2028
        %v2040 = vpack.c.b16 %v2031, %v2030
        %v2041 = vpack.c.b16 %v2033, %v2032
        %2050 = vmatprep.subr.bf16.mxu0 0
        %2051 = vmatpush1.bf16.msra.mxu0 %v2041
        %2052 = vmatprep.subr.bf16.mxu0 0
        %2053 = vmatpush1.bf16.msra.mxu0 %v2040
        %2054 = vmatprep.subr.bf16.mxu0 0
        %2055 = vmatpush1.bf16.msra.mxu0 %v2039
        %2056 = vmatprep.subr.bf16.mxu0 0
        %2057 = vmatpush1.bf16.msra.mxu0 %v2038
        %2058 = vmatprep.subr.bf16.mxu0 0
        %2059 = vmatpush1.bf16.msra.mxu0 %v2037
        %2060 = vmatprep.subr.bf16.mxu0 0
        %2061 = vmatpush1.bf16.msra.mxu0 %v2036
        %2062 = vmatprep.subr.bf16.mxu0 0
        %2063 = vmatpush1.bf16.msra.mxu0 %v2035
        %2064 = vmatprep.subr.bf16.mxu0 0
        %2065 = vmatpush1.bf16.msra.mxu0 %v2034
        %2066 = vmatprep.subr.bf16.mxu0 0
        %2067 = vmatpush2.bf16.msra.mxu0 0
        %2068 = vmatprep.subr.bf16.mxu0 0
        %2069 = vmatpush2.bf16.msra.mxu0 0
        %2070 = vmatprep.subr.bf16.mxu0 0
        %2071 = vmatpush2.bf16.msra.mxu0 0
        %2072 = vmatprep.subr.bf16.mxu0 0
        %2073 = vmatpush2.bf16.msra.mxu0 0
        %2074 = vmatprep.subr.bf16.mxu0 0
        %2075 = vmatpush2.bf16.msra.mxu0 0
        %2076 = vmatprep.subr.bf16.mxu0 0
        %2077 = vmatpush2.bf16.msra.mxu0 0
        %2078 = vmatprep.subr.bf16.mxu0 0
        %2079 = vmatpush2.bf16.msra.mxu0 0
        %2080 = vmatprep.subr.bf16.mxu0 0
        %2081 = vmatpush2.bf16.msra.mxu0 0
        %2082 = vmatprep.mubr.bf16.mxu0 0
        %2083 = vmatmul.mubr.bf16.gmra.mxu0 %v1978
        %v2084 = vpop.f32.mrf.mxu0
        %v2085 = vadd.f32 %v2000, %v2084
        %v2086 = vpop.f32.mrf.mxu0
        %v2087 = vpop.f32.mrf.mxu0
        %v2088 = vpop.f32.mrf.mxu0
        %2089 = vdwg.mxu0
        %v2090 = vadd.f32 %v1873, %v2085
        %2091 = vst.msk [vmem:[%s554] sm:$0xff] %vm563, %v2090
        %s2092 = sand.u32 %s402, 1
        %s2093 = scalar_lea.sflag [#allocation4], %s2092
        %s2094 = sand.u32 %s402, 1
        %s2095 = smul.addr %s2094, 8
        %s2096 = scalar_lea.vmem [#allocation5], %s2095
        // Predicated region
        $region93: #{tpu_custom_call.1} parent=87 // pred_check
          %p2097 = pneg %p412
        $region94: #{tpu_custom_call.1} parent=87 // pred_check_branch
          %2099 = sbr.rel (%p2097) target = $region96
        $region95: #{tpu_custom_call.1} parent=87 // pred_region
          %s2101 = ssub.s32 128, 128
          %2102 = vsyncadd %s2093, %s2101
          %s2103 = smul.addr %s32, 128
          %s2104 = scalar_lea.hbm %s17, %s2103
          %s2106 = sshll.u32 %s2096, 4
          %s2107 = int_to_ptr.vmem [resolvable:$true] %s2106
          %2109 = dma.vmem_to_hbm [thread:$0]  %s2107, 128, %s2104, %s2093
        $region96: #{tpu_custom_call.1} parent=87 // pred_fallthru
          _
      $region88: #{tpu_custom_call.1} parent=5 // pred_fallthru
        _
      %p2110 = scmp.le.s32.totalorder 2, %s27
      // Predicated region
      $region97: #{tpu_custom_call.1} parent=5 // pred_check
        %p2111 = pneg %p2110
      $region98: #{tpu_custom_call.1} parent=5 // pred_check_branch
        %2113 = sbr.rel (%p2111) target = $region100
      $region99: #{tpu_custom_call.1} parent=5 // pred_region
        %s2114 = ssub.s32 %s27, 2
        // Predicated region
        $region101: #{tpu_custom_call.1} parent=99 // pred_check
          %p2115 = pneg %p418
        $region102: #{tpu_custom_call.1} parent=99 // pred_check_branch
          %2117 = sbr.rel (%p2115) target = $region104
        $region103: #{tpu_custom_call.1} parent=99 // pred_region
          %s2118 = sand.u32 %s403, 1
          %s2119 = scalar_lea.sflag [#allocation4], %s2118
          %s2120 = sand.u32 %s403, 1
          %s2121 = smul.addr %s2120, 8
          %s2122 = scalar_lea.vmem [#allocation5], %s2121
          %2123 = dma.done %s2119, 128
        $region104: #{tpu_custom_call.1} parent=99 // pred_fallthru
          _
      $region100: #{tpu_custom_call.1} parent=5 // pred_fallthru
        _
    $region6: #{tpu_custom_call.1} parent=1 // loop_footer
      %s31 = sadd.s32 1, %s27
    $region7: #{tpu_custom_call.1} parent=1 // loop_footer_branch
      %26 = sbr.rel target = $region3
    $region8: #{tpu_custom_call.1} parent=1 // loop_exit
      _
    %2124 = vsyncpa [#allocation3], 1
    %s2125 = scalar_lea.sflag [#allocation3], 1
    %2126 = vsyncpa %s2125, 1
    %2127 = vsyncpa [#allocation4], 1
    %s2128 = scalar_lea.sflag [#allocation4], 1
    %2129 = vsyncpa %s2128, 1

</llo_original>
